<compile_context>
chip_gen: v6e
topology: v6e:2x2x1
jax: 0.10.0
libtpu: 0.0.40
codegen_flags: <defaults>
</compile_context>

<pallas_src>
import functools

import jax
import jax.numpy as jnp
from jax.experimental import pallas as pl
from jax.experimental.pallas import tpu as pltpu


def _round_up(n: int, m: int) -> int:
    return ((n + m - 1) // m) * m


def _mlp_kernel(xd_ref, idx_ref, w1d_ref, w1s_ref, b1_ref, w2_ref, b2_ref,
                o_ref, *, offsets):
    """One batch tile: fused one-hot construction + Linear -> ReLU -> Linear."""
    xd = xd_ref[...]                                      # (TB, D)
    idx = idx_ref[...]                                    # (TB, F) int32
    tb = xd.shape[0]
    vpad = w1s_ref.shape[0]

    # Concatenated one-hot for this tile, built entirely in VMEM as a boolean
    # OR across the (few, static) sparse features; one bf16 cast at the end.
    # Lane l of row b is hot iff l == offsets[j] + idx[b, j] for some j.
    # NOTE: out-of-range sparse indices (invalid input) would silently bleed
    # into a neighbouring feature's segment, exactly like a mis-sized torch
    # one_hot would error; inputs are assumed valid.
    # TODO(synk): for very large sparse vocabularies (sum(classes) >> 4096),
    # replace this one-hot matmul with a manual DMA row-gather of w1s
    # (pl.ANY + make_async_copy) so cost scales with F instead of Vp.
    lane = jax.lax.broadcasted_iota(jnp.int32, (tb, vpad), 1)
    hot = lane == (idx[:, 0:1] + offsets[0])
    for j in range(1, len(offsets)):
        hot = jnp.logical_or(hot, lane == (idx[:, j:j + 1] + offsets[j]))
    onehot = hot.astype(jnp.bfloat16)

    # Layer 1: bf16 MXU matmuls, f32 accumulation; bias + ReLU in f32 (VPU).
    # TODO(synk): on v6e/v7x a single K=(Dp+Vp) matmul (concat weights + a
    # lane-aligned concat of xd/onehot) would halve MXU issue count; skipped
    # here because it needs the dense columns re-padded to a 128-lane boundary.
    h = jnp.dot(xd.astype(jnp.bfloat16), w1d_ref[...],
                preferred_element_type=jnp.float32)
    h = h + jnp.dot(onehot, w1s_ref[...], preferred_element_type=jnp.float32)
    h = jnp.maximum(h + b1_ref[...], 0.0)                 # (1,H) sublane bcast

    # Layer 2 (end_with_linear=True -> no final activation).
    o = jnp.dot(h.astype(jnp.bfloat16), w2_ref[...],
                preferred_element_type=jnp.float32)
    o_ref[...] = (o + b2_ref[...]).astype(o_ref.dtype)


def driver_dense_forward(dense_features, sparse_features, params,
                         sparse_classes, *, block_b: int = 512,
                         out_dtype=jnp.bfloat16):
    """Forward pass of DriverDenseModel.

    dense_features : (B, num_dense) float32 (or bf16)
    sparse_features: (B, F)         int     (class index per sparse feature)
    params         : dict with
        w1d (num_dense, H) bf16   W1 rows for the dense inputs
        w1s (Vp, H)        bf16   W1 rows for the concatenated one-hot
                                  (vocab zero-padded to a 128 multiple)
        b1  (1, H)  f32
        w2  (H, O)  bf16
        b2  (1, O)  f32
    sparse_classes : tuple of int, classes per sparse feature (len == F)
    """
    B, num_dense = dense_features.shape
    F = sparse_features.shape[1]
    assert F == len(sparse_classes)

    D, H = params["w1d"].shape
    assert D == num_dense
    Vp = params["w1s"].shape[0]
    O = params["w2"].shape[1]

    # Static per-feature offsets into the concatenated one-hot vocabulary.
    offsets, acc = [], 0
    for c in sparse_classes:
        offsets.append(acc)
        acc += c

    # Batch tile: large (amortizes ~0.35us/step grid overhead, keeps DMAs
    # streaming), multiple of 8 sublanes, and capped so there are >= 2 grid
    # steps when the batch allows it (keeps both v7x TensorCores busy).
    TB = min(block_b, _round_up(B, 8))
    if B > 16 and pl.cdiv(B, TB) < 2:
        TB = _round_up(pl.cdiv(B, 2), 8)
    grid = (pl.cdiv(B, TB),)          # no batch padding: tail block is masked

    idx = sparse_features.astype(jnp.int32)
    kernel = functools.partial(_mlp_kernel, offsets=tuple(offsets))

    out = pl.pallas_call(
        kernel,
        out_shape=jax.ShapeDtypeStruct((B, O), out_dtype),
        grid_spec=pltpu.PrefetchScalarGridSpec(
            num_scalar_prefetch=0,
            grid=grid,
            in_specs=[
                # Dense tile: last dim equals the full array dim (no 128 pad).
                pl.BlockSpec((TB, num_dense), lambda i: (i, 0)),
                pl.BlockSpec((TB, F), lambda i: (i, 0)),        # sparse indices
                pl.BlockSpec((num_dense, H), lambda i: (0, 0)),  # W1 dense rows
                pl.BlockSpec((Vp, H), lambda i: (0, 0)),         # W1 sparse rows
                pl.BlockSpec((1, H), lambda i: (0, 0)),          # b1
                pl.BlockSpec((H, O), lambda i: (0, 0)),          # W2
                pl.BlockSpec((1, O), lambda i: (0, 0)),          # b2
            ],
            out_specs=pl.BlockSpec((TB, O), lambda i: (i, 0)),
        ),
        compiler_params=pltpu.CompilerParams(
            dimension_semantics=("parallel",),                   # megacore
        ),
    )(dense_features, idx, params["w1d"], params["w1s"], params["b1"],
      params["w2"], params["b2"])

    return out


def init_params(key, num_dense, sparse_classes, hidden=256, out=256):
    """Torch-Linear-style init; weights stored bf16 for the MXU."""
    V = sum(sparse_classes)
    in_features = num_dense + V
    Vp = _round_up(max(V, 1), 128)

    k1, k2, k3, k4 = jax.random.split(key, 4)
    lim1 = 1.0 / jnp.sqrt(in_features)
    lim2 = 1.0 / jnp.sqrt(hidden)
    w1 = jax.random.uniform(k1, (in_features, hidden), jnp.float32, -lim1, lim1)
    b1 = jax.random.uniform(k2, (1, hidden), jnp.float32, -lim1, lim1)
    w2 = jax.random.uniform(k3, (hidden, out), jnp.float32, -lim2, lim2)
    b2 = jax.random.uniform(k4, (1, out), jnp.float32, -lim2, lim2)

    w1d = w1[:num_dense]                                           # (D, H)
    w1s = jnp.zeros((Vp, hidden), jnp.float32).at[:V].set(w1[num_dense:])
    return {
        "w1d": w1d.astype(jnp.bfloat16),
        "w1s": w1s.astype(jnp.bfloat16),
        "b1": b1,
        "w2": w2.astype(jnp.bfloat16),
        "b2": b2,
    }


if __name__ == "__main__":
    # Small but tile-friendly shapes: 2 batch tiles of 128 rows.
    B = 256
    num_dense = 16
    sparse_classes = (8, 12, 20)          # classes per sparse feature
    F = len(sparse_classes)

    key = jax.random.PRNGKey(0)
    k_dense, k_sparse, k_params = jax.random.split(key, 3)

    dense_features = jax.random.normal(k_dense, (B, num_dense), dtype=jnp.float32)
    sparse_cols = [
        jax.random.randint(jax.random.fold_in(k_sparse, j), (B,), 0, c, dtype=jnp.int32)
        for j, c in enumerate(sparse_classes)
    ]
    sparse_features = jnp.stack(sparse_cols, axis=-1)     # (B, F) int32

    params = init_params(k_params, num_dense, sparse_classes)

    out = driver_dense_forward(dense_features, sparse_features, params, sparse_classes)
    out = jax.block_until_ready(out)

    # Plain-JAX reference with the same (bf16-rounded) numerics.
    w1d = params["w1d"].astype(jnp.float32)
    w1s = params["w1s"].astype(jnp.float32)
    w2 = params["w2"].astype(jnp.float32)
    Vp = w1s.shape[0]
    V = sum(sparse_classes)

    xd_ref = dense_features.astype(jnp.bfloat16).astype(jnp.float32)
    one_hots = [jax.nn.one_hot(sparse_features[:, j], c, dtype=jnp.float32)
                for j, c in enumerate(sparse_classes)]
    oh_ref = jnp.pad(jnp.concatenate(one_hots, axis=-1), ((0, 0), (0, Vp - V)))
    h_ref = jnp.maximum(xd_ref @ w1d + oh_ref @ w1s + params["b1"], 0.0)
    ref = h_ref.astype(jnp.bfloat16).astype(jnp.float32) @ w2 + params["b2"]
    ref = ref.astype(jnp.bfloat16).astype(jnp.float32)

    out_f32 = out.astype(jnp.float32)
    assert out.shape == (B, 256)
    assert out.dtype == jnp.bfloat16
    assert jnp.allclose(out_f32, ref, atol=3e-2, rtol=3e-2), \
        float(jnp.max(jnp.abs(out_f32 - ref)))

    print("KERNEL_OK")
</pallas_src>

<mosaic_0001>
module attributes {stable_mosaic.version = 11 : i64} {
  func.func @_mlp_kernel(%arg0: i32, %arg1: memref<128x16xf32, #tpu.memory_space<vmem>>, %arg2: memref<128x3xi32, #tpu.memory_space<vmem>>, %arg3: memref<16x256xbf16, #tpu.memory_space<vmem>>, %arg4: memref<128x256xbf16, #tpu.memory_space<vmem>>, %arg5: memref<1x256xf32, #tpu.memory_space<vmem>>, %arg6: memref<256x256xbf16, #tpu.memory_space<vmem>>, %arg7: memref<1x256xf32, #tpu.memory_space<vmem>>, %arg8: memref<128x256xbf16, #tpu.memory_space<vmem>>) attributes {dimension_semantics = [#tpu.dimension_semantics<parallel>], iteration_bounds = array<i64: 2>, scalar_prefetch = 0 : i64, scratch_operands = 0 : i64, tpu.core_type = #tpu.core_type<tc>, window_params = [{transform_indices = @transform_0, window_bounds = array<i64: 128, 16>}, {transform_indices = @transform_1, window_bounds = array<i64: 128, 3>}, {pipeline_mode = #tpu.pipeline_mode<synchronous>, transform_indices = @transform_2, window_bounds = array<i64: 16, 256>}, {pipeline_mode = #tpu.pipeline_mode<synchronous>, transform_indices = @transform_3, window_bounds = array<i64: 128, 256>}, {pipeline_mode = #tpu.pipeline_mode<synchronous>, transform_indices = @transform_4, window_bounds = array<i64: 1, 256>}, {pipeline_mode = #tpu.pipeline_mode<synchronous>, transform_indices = @transform_5, window_bounds = array<i64: 256, 256>}, {pipeline_mode = #tpu.pipeline_mode<synchronous>, transform_indices = @transform_6, window_bounds = array<i64: 1, 256>}, {transform_indices = @transform_7, window_bounds = array<i64: 128, 256>}]} {
    %c0 = arith.constant 0 : index
    %c0_0 = arith.constant 0 : index
    %0 = vector.load %arg1[%c0, %c0_0] : memref<128x16xf32, #tpu.memory_space<vmem>>, vector<128x16xf32>
    %c0_1 = arith.constant 0 : index
    %c0_2 = arith.constant 0 : index
    %1 = vector.load %arg2[%c0_1, %c0_2] : memref<128x3xi32, #tpu.memory_space<vmem>>, vector<128x3xi32>
    %2 = tpu.iota {dimensions = array<i32: 1>} : vector<128x128xi32>
    %3 = vector.extract_strided_slice %1 {offsets = [0, 0], sizes = [128, 1], strides = [1, 1]} : vector<128x3xi32> to vector<128x1xi32>
    %c0_i32 = arith.constant 0 : i32
    %4 = vector.broadcast %c0_i32 : i32 to vector<128x1xi32>
    %5 = arith.addi %3, %4 : vector<128x1xi32>
    %6 = vector.broadcast %5 : vector<128x1xi32> to vector<128x128xi32>
    %7 = arith.cmpi eq, %2, %6 : vector<128x128xi32>
    %8 = vector.extract_strided_slice %1 {offsets = [0, 1], sizes = [128, 1], strides = [1, 1]} : vector<128x3xi32> to vector<128x1xi32>
    %c8_i32 = arith.constant 8 : i32
    %9 = vector.broadcast %c8_i32 : i32 to vector<128x1xi32>
    %10 = arith.addi %8, %9 : vector<128x1xi32>
    %11 = vector.broadcast %10 : vector<128x1xi32> to vector<128x128xi32>
    %12 = arith.cmpi eq, %2, %11 : vector<128x128xi32>
    %13 = arith.ori %7, %12 : vector<128x128xi1>
    %14 = vector.extract_strided_slice %1 {offsets = [0, 2], sizes = [128, 1], strides = [1, 1]} : vector<128x3xi32> to vector<128x1xi32>
    %c20_i32 = arith.constant 20 : i32
    %15 = vector.broadcast %c20_i32 : i32 to vector<128x1xi32>
    %16 = arith.addi %14, %15 : vector<128x1xi32>
    %17 = vector.broadcast %16 : vector<128x1xi32> to vector<128x128xi32>
    %18 = arith.cmpi eq, %2, %17 : vector<128x128xi32>
    %19 = arith.ori %13, %18 : vector<128x128xi1>
    %20 = arith.extui %19 : vector<128x128xi1> to vector<128x128xi32>
    %21 = arith.sitofp %20 : vector<128x128xi32> to vector<128x128xf32>
    %22 = arith.truncf %21 : vector<128x128xf32> to vector<128x128xbf16>
    %23 = arith.truncf %0 : vector<128x16xf32> to vector<128x16xbf16>
    %c0_3 = arith.constant 0 : index
    %c0_4 = arith.constant 0 : index
    %24 = vector.load %arg3[%c0_3, %c0_4] : memref<16x256xbf16, #tpu.memory_space<vmem>>, vector<16x256xbf16>
    %cst = arith.constant dense<0.000000e+00> : vector<128x256xf32>
    %25 = tpu.matmul %23, %24, %cst {dimension_numbers = #tpu.dot_dimension_numbers<[1], [0], [0], [1], [0, 0, 1, 1], [], []>} : vector<128x16xbf16>, vector<16x256xbf16>, vector<128x256xf32> -> vector<128x256xf32>
    %c0_5 = arith.constant 0 : index
    %c0_6 = arith.constant 0 : index
    %26 = vector.load %arg4[%c0_5, %c0_6] : memref<128x256xbf16, #tpu.memory_space<vmem>>, vector<128x256xbf16>
    %cst_7 = arith.constant dense<0.000000e+00> : vector<128x256xf32>
    %27 = tpu.matmul %22, %26, %cst_7 {dimension_numbers = #tpu.dot_dimension_numbers<[1], [0], [0], [1], [0, 0, 1, 1], [], []>} : vector<128x128xbf16>, vector<128x256xbf16>, vector<128x256xf32> -> vector<128x256xf32>
    %28 = arith.addf %25, %27 : vector<128x256xf32>
    %c0_8 = arith.constant 0 : index
    %c0_9 = arith.constant 0 : index
    %29 = vector.load %arg5[%c0_8, %c0_9] : memref<1x256xf32, #tpu.memory_space<vmem>>, vector<1x256xf32>
    %30 = vector.broadcast %29 : vector<1x256xf32> to vector<128x256xf32>
    %31 = arith.addf %28, %30 : vector<128x256xf32>
    %cst_10 = arith.constant 0.000000e+00 : f32
    %32 = vector.broadcast %cst_10 : f32 to vector<128x256xf32>
    %33 = arith.maximumf %31, %32 : vector<128x256xf32>
    %34 = arith.truncf %33 : vector<128x256xf32> to vector<128x256xbf16>
    %c0_11 = arith.constant 0 : index
    %c0_12 = arith.constant 0 : index
    %35 = vector.load %arg6[%c0_11, %c0_12] : memref<256x256xbf16, #tpu.memory_space<vmem>>, vector<256x256xbf16>
    %cst_13 = arith.constant dense<0.000000e+00> : vector<128x256xf32>
    %36 = tpu.matmul %34, %35, %cst_13 {dimension_numbers = #tpu.dot_dimension_numbers<[1], [0], [0], [1], [0, 0, 1, 1], [], []>} : vector<128x256xbf16>, vector<256x256xbf16>, vector<128x256xf32> -> vector<128x256xf32>
    %c0_14 = arith.constant 0 : index
    %c0_15 = arith.constant 0 : index
    %37 = vector.load %arg7[%c0_14, %c0_15] : memref<1x256xf32, #tpu.memory_space<vmem>>, vector<1x256xf32>
    %38 = vector.broadcast %37 : vector<1x256xf32> to vector<128x256xf32>
    %39 = arith.addf %36, %38 : vector<128x256xf32>
    %40 = arith.truncf %39 : vector<128x256xf32> to vector<128x256xbf16>
    %c0_16 = arith.constant 0 : index
    %c0_17 = arith.constant 0 : index
    %41 = vector.load %arg8[%c0_16, %c0_17] : memref<128x256xbf16, #tpu.memory_space<vmem>>, vector<128x256xbf16>
    tpu.vector_store %arg8[%c0_16, %c0_17], %40 {strides = array<i32>} : memref<128x256xbf16, #tpu.memory_space<vmem>>, vector<128x256xbf16>,
    return
  }
  func.func @transform_0(%arg0: i32) -> (i32, i32) {
    %c0_i32 = arith.constant 0 : i32
    %c0_i32_0 = arith.constant 0 : i32
    return %arg0, %c0_i32 : i32, i32
  }
  func.func @transform_1(%arg0: i32) -> (i32, i32) {
    %c0_i32 = arith.constant 0 : i32
    %c0_i32_0 = arith.constant 0 : i32
    return %arg0, %c0_i32 : i32, i32
  }
  func.func @transform_2(%arg0: i32) -> (i32, i32) {
    %c0_i32 = arith.constant 0 : i32
    %c0_i32_0 = arith.constant 0 : i32
    %c0_i32_1 = arith.constant 0 : i32
    return %c0_i32, %c0_i32_0 : i32, i32
  }
  func.func @transform_3(%arg0: i32) -> (i32, i32) {
    %c0_i32 = arith.constant 0 : i32
    %c0_i32_0 = arith.constant 0 : i32
    %c0_i32_1 = arith.constant 0 : i32
    return %c0_i32, %c0_i32_0 : i32, i32
  }
  func.func @transform_4(%arg0: i32) -> (i32, i32) {
    %c0_i32 = arith.constant 0 : i32
    %c0_i32_0 = arith.constant 0 : i32
    %c0_i32_1 = arith.constant 0 : i32
    return %c0_i32, %c0_i32_0 : i32, i32
  }
  func.func @transform_5(%arg0: i32) -> (i32, i32) {
    %c0_i32 = arith.constant 0 : i32
    %c0_i32_0 = arith.constant 0 : i32
    %c0_i32_1 = arith.constant 0 : i32
    return %c0_i32, %c0_i32_0 : i32, i32
  }
  func.func @transform_6(%arg0: i32) -> (i32, i32) {
    %c0_i32 = arith.constant 0 : i32
    %c0_i32_0 = arith.constant 0 : i32
    %c0_i32_1 = arith.constant 0 : i32
    return %c0_i32, %c0_i32_0 : i32, i32
  }
  func.func @transform_7(%arg0: i32) -> (i32, i32) {
    %c0_i32 = arith.constant 0 : i32
    %c0_i32_0 = arith.constant 0 : i32
    return %arg0, %c0_i32 : i32, i32
  }
}

</mosaic_0001>

<llo_original>
// kernel: tpu_custom_call.1
$region0: #{tpu_custom_call.1}
  #allocation0 [shape = 'u32[]', space=smem, size = 0x4, offset = 0x4, fixed_abs, tag = 'smem constant byte address 0x4 - core index']
  #allocation1 [shape = 'u32[144,128]{1,0:T(1,128)}', space=vmem, size = 0x12000, scoped, tag = 'internal scratch']
  %s0 = inlined_call_operand.vmem [shape: f32[256,16], index: 0, kind: input, shape index: {}]
  %s1 = inlined_call_operand.vmem [shape: s32[256,3], index: 1, kind: input, shape index: {}]
  %s2 = inlined_call_operand.vmem [shape: bf16[16,256], index: 2, kind: input, shape index: {}]
  %s3 = inlined_call_operand.vmem [shape: bf16[128,256], index: 3, kind: input, shape index: {}]
  %s4 = inlined_call_operand.vmem [shape: f32[1,256], index: 4, kind: input, shape index: {}]
  %s5 = inlined_call_operand.vmem [shape: bf16[256,256], index: 5, kind: input, shape index: {}]
  %s6 = inlined_call_operand.vmem [shape: f32[1,256], index: 6, kind: input, shape index: {}]
  %s7 = inlined_call_operand.hbm [shape: bf16[256,256], index: 7, kind: output, shape index: {}]
  %s8 = sld [smem:[#allocation0]]
  $region61: #{tpu_custom_call.1} parent=0
    _
  %s10 = ssub.s32 1, %s8
  %s11 = scalar_select 0, %s10, %s8
  $region1: #{tpu_custom_call.1} parent=0
    #allocation2 [shape = 'u8[131072]{0}', space=vmem, size = 0x20000, scoped, tag = 'output window, operand 0']
    #allocation3 [shape = 's32[2]{0}', space=sflag, size = 0x8, scoped, tag = 'scoped memory for tpu_custom_call.1']
    %12 = vsyncpa [#allocation3], 0
    %s13 = scalar_lea.sflag [#allocation3], 1
    %14 = vsyncpa %s13, 0
    loop: start=0, step=1, limit=4
    $region2: #{tpu_custom_call.1} parent=1 // loop_pre_header
      _
    $region3: #{tpu_custom_call.1} parent=1 // loop_header
      %s16 = sphi 0, %s20
      %p17 = scmp.ge.s32.totalorder %s16, 4
      %s26 = sphi 0, %s28
      %s29 = sphi 0, %s26
      %s30 = sphi 0, %s29
      %s46 = sphi 0, %s30
      %s52 = sphi 0, %s54
      %s55 = sphi 0, %s52
      %s56 = sphi 0, %s55
      %s72 = sphi 0, %s56
      %s76 = sphi 0, %s76
      %s78 = sphi 0, %s76
      %s79 = sphi 0, %s78
      %s93 = sphi 0, %s79
      %s97 = sphi 0, %s97
      %s99 = sphi 0, %s97
      %s100 = sphi 0, %s99
      %s114 = sphi 0, %s100
      %s118 = sphi 0, %s118
      %s120 = sphi 0, %s118
      %s121 = sphi 0, %s120
      %s135 = sphi 0, %s121
      %s139 = sphi 0, %s139
      %s141 = sphi 0, %s139
      %s142 = sphi 0, %s141
      %s156 = sphi 0, %s142
      %s160 = sphi 0, %s160
      %s162 = sphi 0, %s160
      %s163 = sphi 0, %s162
      %s177 = sphi 0, %s163
      %s183 = sphi 0, %s185
      %s186 = sphi 0, %s183
      %s187 = sphi 0, %s186
      %s203 = sphi 0, %s187
    $region4: #{tpu_custom_call.1} parent=1 // loop_header_branch
      %19 = sbr.rel (%p17) target = $region8
    $region5: #{tpu_custom_call.1} parent=1 // loop_body
      %s21 = ssub.s32 %s16, 1
      %s22 = ssub.s32 %s16, 2
      %s23 = sadd.s32 %s16, 1
      %s24 = ssub.s32 %s16, %s23
      %p25 = scmp.eq.s32.totalorder %s24, 0
      %s27 = sadd.s32 %s26, 1
      %s28 = scalar_select %p25, %s26, %s27
      %p31 = pneg %p25
      %p32 = scmp.eq.s32.totalorder %s16, 1
      %p33 = por %p31, %p32
      %p34 = scmp.ne.s32.totalorder %s26, %s29
      %p35 = scmp.eq.s32.totalorder %s16, 0
      %p36 = por %p34, %p35
      %p37 = scmp.ne.s32.totalorder %s26, %s29
      %p38 = scmp.eq.s32.totalorder %s21, 1
      %p39 = por %p37, %p38
      %p40 = scmp.ne.s32.totalorder %s29, %s30
      %p41 = scmp.eq.s32.totalorder %s21, 0
      %p42 = por %p40, %p41
      %p43 = scmp.ne.s32.totalorder %s29, %s30
      %p44 = scmp.eq.s32.totalorder %s22, 1
      %p45 = por %p43, %p44
      %p47 = scmp.ne.s32.totalorder %s30, %s46
      %p48 = scmp.eq.s32.totalorder %s22, 0
      %p49 = por %p47, %p48
      %s50 = ssub.s32 %s16, %s23
      %p51 = scmp.eq.s32.totalorder %s50, 0
      %s53 = sadd.s32 %s52, 1
      %s54 = scalar_select %p51, %s52, %s53
      %p57 = pneg %p51
      %p58 = scmp.eq.s32.totalorder %s16, 1
      %p59 = por %p57, %p58
      %p60 = scmp.ne.s32.totalorder %s52, %s55
      %p61 = scmp.eq.s32.totalorder %s16, 0
      %p62 = por %p60, %p61
      %p63 = scmp.ne.s32.totalorder %s52, %s55
      %p64 = scmp.eq.s32.totalorder %s21, 1
      %p65 = por %p63, %p64
      %p66 = scmp.ne.s32.totalorder %s55, %s56
      %p67 = scmp.eq.s32.totalorder %s21, 0
      %p68 = por %p66, %p67
      %p69 = scmp.ne.s32.totalorder %s55, %s56
      %p70 = scmp.eq.s32.totalorder %s22, 1
      %p71 = por %p69, %p70
      %p73 = scmp.ne.s32.totalorder %s56, %s72
      %p74 = scmp.eq.s32.totalorder %s22, 0
      %p75 = por %p73, %p74
      %s77 = sadd.s32 %s76, 1
      %p80 = scmp.eq.s32.totalorder %s16, 1
      %p81 = scmp.ne.s32.totalorder %s76, %s78
      %p82 = scmp.eq.s32.totalorder %s16, 0
      %p83 = por %p81, %p82
      %p84 = scmp.ne.s32.totalorder %s76, %s78
      %p85 = scmp.eq.s32.totalorder %s21, 1
      %p86 = por %p84, %p85
      %p87 = scmp.ne.s32.totalorder %s78, %s79
      %p88 = scmp.eq.s32.totalorder %s21, 0
      %p89 = por %p87, %p88
      %p90 = scmp.ne.s32.totalorder %s78, %s79
      %p91 = scmp.eq.s32.totalorder %s22, 1
      %p92 = por %p90, %p91
      %p94 = scmp.ne.s32.totalorder %s79, %s93
      %p95 = scmp.eq.s32.totalorder %s22, 0
      %p96 = por %p94, %p95
      %s98 = sadd.s32 %s97, 1
      %p101 = scmp.eq.s32.totalorder %s16, 1
      %p102 = scmp.ne.s32.totalorder %s97, %s99
      %p103 = scmp.eq.s32.totalorder %s16, 0
      %p104 = por %p102, %p103
      %p105 = scmp.ne.s32.totalorder %s97, %s99
      %p106 = scmp.eq.s32.totalorder %s21, 1
      %p107 = por %p105, %p106
      %p108 = scmp.ne.s32.totalorder %s99, %s100
      %p109 = scmp.eq.s32.totalorder %s21, 0
      %p110 = por %p108, %p109
      %p111 = scmp.ne.s32.totalorder %s99, %s100
      %p112 = scmp.eq.s32.totalorder %s22, 1
      %p113 = por %p111, %p112
      %p115 = scmp.ne.s32.totalorder %s100, %s114
      %p116 = scmp.eq.s32.totalorder %s22, 0
      %p117 = por %p115, %p116
      %s119 = sadd.s32 %s118, 1
      %p122 = scmp.eq.s32.totalorder %s16, 1
      %p123 = scmp.ne.s32.totalorder %s118, %s120
      %p124 = scmp.eq.s32.totalorder %s16, 0
      %p125 = por %p123, %p124
      %p126 = scmp.ne.s32.totalorder %s118, %s120
      %p127 = scmp.eq.s32.totalorder %s21, 1
      %p128 = por %p126, %p127
      %p129 = scmp.ne.s32.totalorder %s120, %s121
      %p130 = scmp.eq.s32.totalorder %s21, 0
      %p131 = por %p129, %p130
      %p132 = scmp.ne.s32.totalorder %s120, %s121
      %p133 = scmp.eq.s32.totalorder %s22, 1
      %p134 = por %p132, %p133
      %p136 = scmp.ne.s32.totalorder %s121, %s135
      %p137 = scmp.eq.s32.totalorder %s22, 0
      %p138 = por %p136, %p137
      %s140 = sadd.s32 %s139, 1
      %p143 = scmp.eq.s32.totalorder %s16, 1
      %p144 = scmp.ne.s32.totalorder %s139, %s141
      %p145 = scmp.eq.s32.totalorder %s16, 0
      %p146 = por %p144, %p145
      %p147 = scmp.ne.s32.totalorder %s139, %s141
      %p148 = scmp.eq.s32.totalorder %s21, 1
      %p149 = por %p147, %p148
      %p150 = scmp.ne.s32.totalorder %s141, %s142
      %p151 = scmp.eq.s32.totalorder %s21, 0
      %p152 = por %p150, %p151
      %p153 = scmp.ne.s32.totalorder %s141, %s142
      %p154 = scmp.eq.s32.totalorder %s22, 1
      %p155 = por %p153, %p154
      %p157 = scmp.ne.s32.totalorder %s142, %s156
      %p158 = scmp.eq.s32.totalorder %s22, 0
      %p159 = por %p157, %p158
      %s161 = sadd.s32 %s160, 1
      %p164 = scmp.eq.s32.totalorder %s16, 1
      %p165 = scmp.ne.s32.totalorder %s160, %s162
      %p166 = scmp.eq.s32.totalorder %s16, 0
      %p167 = por %p165, %p166
      %p168 = scmp.ne.s32.totalorder %s160, %s162
      %p169 = scmp.eq.s32.totalorder %s21, 1
      %p170 = por %p168, %p169
      %p171 = scmp.ne.s32.totalorder %s162, %s163
      %p172 = scmp.eq.s32.totalorder %s21, 0
      %p173 = por %p171, %p172
      %p174 = scmp.ne.s32.totalorder %s162, %s163
      %p175 = scmp.eq.s32.totalorder %s22, 1
      %p176 = por %p174, %p175
      %p178 = scmp.ne.s32.totalorder %s163, %s177
      %p179 = scmp.eq.s32.totalorder %s22, 0
      %p180 = por %p178, %p179
      %s181 = ssub.s32 %s16, %s23
      %p182 = scmp.eq.s32.totalorder %s181, 0
      %s184 = sadd.s32 %s183, 1
      %s185 = scalar_select %p182, %s183, %s184
      %p188 = pneg %p182
      %p189 = scmp.eq.s32.totalorder %s16, 1
      %p190 = por %p188, %p189
      %p191 = scmp.ne.s32.totalorder %s183, %s186
      %p192 = scmp.eq.s32.totalorder %s16, 0
      %p193 = por %p191, %p192
      %p194 = scmp.ne.s32.totalorder %s183, %s186
      %p195 = scmp.eq.s32.totalorder %s21, 1
      %p196 = por %p194, %p195
      %p197 = scmp.ne.s32.totalorder %s186, %s187
      %p198 = scmp.eq.s32.totalorder %s21, 0
      %p199 = por %p197, %p198
      %p200 = scmp.ne.s32.totalorder %s186, %s187
      %p201 = scmp.eq.s32.totalorder %s22, 1
      %p202 = por %p200, %p201
      %p204 = scmp.ne.s32.totalorder %s187, %s203
      %p205 = scmp.eq.s32.totalorder %s22, 0
      %p206 = por %p204, %p205
      %p207 = scmp.le.s32.totalorder 1, %s16
      %p208 = scmp.lt.s32.totalorder %s16, 3
      %p209 = pnand %p207, %p208
      %p210 = pneg %p209
      // Predicated region
      $region9: #{tpu_custom_call.1} parent=5 // pred_check
        _
      $region10: #{tpu_custom_call.1} parent=5 // pred_check_branch
        %212 = sbr.rel (%p209) target = $region12
      $region11: #{tpu_custom_call.1} parent=5 // pred_region
        %s213 = ssub.s32 %s16, 1
        // Predicated region
        $region13: #{tpu_custom_call.1} parent=11 // pred_check
          %p214 = pneg %p89
        $region14: #{tpu_custom_call.1} parent=11 // pred_check_branch
          %216 = sbr.rel (%p214) target = $region16
        $region15: #{tpu_custom_call.1} parent=11 // pred_region
          _
        $region16: #{tpu_custom_call.1} parent=11 // pred_fallthru
          _
        // Predicated region
        $region17: #{tpu_custom_call.1} parent=11 // pred_check
          %p217 = pneg %p110
        $region18: #{tpu_custom_call.1} parent=11 // pred_check_branch
          %219 = sbr.rel (%p217) target = $region20
        $region19: #{tpu_custom_call.1} parent=11 // pred_region
          _
        $region20: #{tpu_custom_call.1} parent=11 // pred_fallthru
          _
        // Predicated region
        $region21: #{tpu_custom_call.1} parent=11 // pred_check
          %p220 = pneg %p131
        $region22: #{tpu_custom_call.1} parent=11 // pred_check_branch
          %222 = sbr.rel (%p220) target = $region24
        $region23: #{tpu_custom_call.1} parent=11 // pred_region
          _
        $region24: #{tpu_custom_call.1} parent=11 // pred_fallthru
          _
        // Predicated region
        $region25: #{tpu_custom_call.1} parent=11 // pred_check
          %p223 = pneg %p152
        $region26: #{tpu_custom_call.1} parent=11 // pred_check_branch
          %225 = sbr.rel (%p223) target = $region28
        $region27: #{tpu_custom_call.1} parent=11 // pred_region
          _
        $region28: #{tpu_custom_call.1} parent=11 // pred_fallthru
          _
        // Predicated region
        $region29: #{tpu_custom_call.1} parent=11 // pred_check
          %p226 = pneg %p173
        $region30: #{tpu_custom_call.1} parent=11 // pred_check_branch
          %228 = sbr.rel (%p226) target = $region32
        $region31: #{tpu_custom_call.1} parent=11 // pred_region
          _
        $region32: #{tpu_custom_call.1} parent=11 // pred_fallthru
          _
      $region12: #{tpu_custom_call.1} parent=5 // pred_fallthru
        _
      %p229 = scmp.lt.s32.totalorder %s16, 2
      // Predicated region
      $region33: #{tpu_custom_call.1} parent=5 // pred_check
        %p230 = pneg %p229
      $region34: #{tpu_custom_call.1} parent=5 // pred_check_branch
        %232 = sbr.rel (%p230) target = $region36
      $region35: #{tpu_custom_call.1} parent=5 // pred_region
        // Predicated region
        $region37: #{tpu_custom_call.1} parent=35 // pred_check
          %p233 = pneg %p36
        $region38: #{tpu_custom_call.1} parent=35 // pred_check_branch
          %235 = sbr.rel (%p233) target = $region40
        $region39: #{tpu_custom_call.1} parent=35 // pred_region
          %s236 = smul.u32 16, %s16
          %p237 = scmp.lt.s32.totalorder %s236, 31
          %s238 = scalar_select %p237, %s236, 31
          %s239 = smul.addr %s238, 8
          %s240 = scalar_lea.vmem %s0, %s239
          %s241 = smul.u32 16, %s16
        $region40: #{tpu_custom_call.1} parent=35 // pred_fallthru
          _
        // Predicated region
        $region41: #{tpu_custom_call.1} parent=35 // pred_check
          %p242 = pneg %p62
        $region42: #{tpu_custom_call.1} parent=35 // pred_check_branch
          %244 = sbr.rel (%p242) target = $region44
        $region43: #{tpu_custom_call.1} parent=35 // pred_region
          %s245 = smul.u32 16, %s16
          %p246 = scmp.lt.s32.totalorder %s245, 31
          %s247 = scalar_select %p246, %s245, 31
          %s248 = smul.addr %s247, 8
          %s249 = scalar_lea.vmem %s1, %s248
          %s250 = smul.u32 16, %s16
        $region44: #{tpu_custom_call.1} parent=35 // pred_fallthru
          _
      $region36: #{tpu_custom_call.1} parent=5 // pred_fallthru
        _
      %p251 = scmp.le.s32.totalorder 1, %s16
      %p252 = scmp.lt.s32.totalorder %s16, 3
      %p253 = pnand %p251, %p252
      %p254 = pneg %p253
      // Predicated region
      $region45: #{tpu_custom_call.1} parent=5 // pred_check
        _
      $region46: #{tpu_custom_call.1} parent=5 // pred_check_branch
        %256 = sbr.rel (%p253) target = $region48
      $region47: #{tpu_custom_call.1} parent=5 // pred_region
        %s257 = ssub.s32 %s16, 1
        %s258 = smul.u32 16, %s21
        %p259 = scmp.lt.s32.totalorder %s258, 31
        %s260 = scalar_select %p259, %s258, 31
        %s261 = smul.addr %s260, 8
        %s262 = scalar_lea.vmem %s0, %s261
        %p263 = pneg %p42
        %p264 = pneg %p39
        %s265 = smul.u32 16, %s21
        %p266 = scmp.lt.s32.totalorder %s265, 31
        %s267 = scalar_select %p266, %s265, 31
        %s268 = smul.addr %s267, 8
        %s269 = scalar_lea.vmem %s1, %s268
        %p270 = pneg %p68
        %p271 = pneg %p65
        %p272 = pneg %p89
        %p273 = pneg %p86
        %p274 = pneg %p110
        %p275 = pneg %p107
        %p276 = pneg %p131
        %p277 = pneg %p128
        %p278 = pneg %p152
        %p279 = pneg %p149
        %p280 = pneg %p173
        %p281 = pneg %p170
        %p282 = pneg %p199
        %p283 = pneg %p196
        %s284 = sand.u32 %s186, 1
        %s285 = scalar_lea.sflag [#allocation3], %s284
        %s286 = sand.u32 %s186, 1
        %s287 = smul.addr %s286, 128
        %s288 = scalar_lea.vmem [#allocation2], %s287
        %s289 = smul.u32 16, %s21
        %p290 = scmp.lt.s32.totalorder %s289, 31
        %s291 = scalar_select %p290, %s289, 31
        %s292 = smul.addr %s291, 8
        %s293 = scalar_lea.vmem %s0, %s292
        %s294 = smul.u32 16, %s21
        %s295 = smul.u32 16, %s21
        %p296 = scmp.lt.s32.totalorder %s295, 31
        %s297 = scalar_select %p296, %s295, 31
        %s298 = smul.addr %s297, 8
        %s299 = scalar_lea.vmem %s1, %s298
        %s300 = smul.u32 16, %s21
        %s301 = smul.u32 16, %s21
        %v303 = vld [vmem:[%s293] sm:$0xff]
        %v304 = vld [vmem:[%s293 + $0x8] sm:$0xff]
        %v305 = vld [vmem:[%s293 + $0x10] sm:$0xff]
        %v306 = vld [vmem:[%s293 + $0x18] sm:$0xff]
        %v307 = vld [vmem:[%s293 + $0x20] sm:$0xff]
        %v308 = vld [vmem:[%s293 + $0x28] sm:$0xff]
        %v309 = vld [vmem:[%s293 + $0x30] sm:$0xff]
        %v310 = vld [vmem:[%s293 + $0x38] sm:$0xff]
        %v311 = vld [vmem:[%s293 + $0x40] sm:$0xff]
        %v312 = vld [vmem:[%s293 + $0x48] sm:$0xff]
        %v313 = vld [vmem:[%s293 + $0x50] sm:$0xff]
        %v314 = vld [vmem:[%s293 + $0x58] sm:$0xff]
        %v315 = vld [vmem:[%s293 + $0x60] sm:$0xff]
        %v316 = vld [vmem:[%s293 + $0x68] sm:$0xff]
        %v317 = vld [vmem:[%s293 + $0x70] sm:$0xff]
        %v318 = vld [vmem:[%s293 + $0x78] sm:$0xff]
        %v319 = vld [vmem:[%s299] sm:$0xff]
        %v320 = vld [vmem:[%s299 + $0x8] sm:$0xff]
        %v321 = vld [vmem:[%s299 + $0x10] sm:$0xff]
        %v322 = vld [vmem:[%s299 + $0x18] sm:$0xff]
        %v323 = vld [vmem:[%s299 + $0x20] sm:$0xff]
        %v324 = vld [vmem:[%s299 + $0x28] sm:$0xff]
        %v325 = vld [vmem:[%s299 + $0x30] sm:$0xff]
        %v326 = vld [vmem:[%s299 + $0x38] sm:$0xff]
        %v327 = vld [vmem:[%s299 + $0x40] sm:$0xff]
        %v328 = vld [vmem:[%s299 + $0x48] sm:$0xff]
        %v329 = vld [vmem:[%s299 + $0x50] sm:$0xff]
        %v330 = vld [vmem:[%s299 + $0x58] sm:$0xff]
        %v331 = vld [vmem:[%s299 + $0x60] sm:$0xff]
        %v332 = vld [vmem:[%s299 + $0x68] sm:$0xff]
        %v333 = vld [vmem:[%s299 + $0x70] sm:$0xff]
        %v334 = vld [vmem:[%s299 + $0x78] sm:$0xff]
        %v335 = vlaneseq
        %v336 = vand.u32 %v335, 127
        %337 = vset.pattern.permute.xlu0 0
        %338 = vperm.xlu0 %337, %v319
        %v339 = vpop.permute.xlu0 %338
        %340 = vset.pattern.permute.xlu0 0
        %341 = vperm.xlu0 %340, %v320
        %v342 = vpop.permute.xlu0 %341
        %343 = vset.pattern.permute.xlu0 0
        %344 = vperm.xlu0 %343, %v321
        %v345 = vpop.permute.xlu0 %344
        %346 = vset.pattern.permute.xlu0 0
        %347 = vperm.xlu0 %346, %v322
        %v348 = vpop.permute.xlu0 %347
        %349 = vset.pattern.permute.xlu0 0
        %350 = vperm.xlu0 %349, %v323
        %v351 = vpop.permute.xlu0 %350
        %352 = vset.pattern.permute.xlu0 0
        %353 = vperm.xlu0 %352, %v324
        %v354 = vpop.permute.xlu0 %353
        %355 = vset.pattern.permute.xlu0 0
        %356 = vperm.xlu0 %355, %v325
        %v357 = vpop.permute.xlu0 %356
        %358 = vset.pattern.permute.xlu0 0
        %359 = vperm.xlu0 %358, %v326
        %v360 = vpop.permute.xlu0 %359
        %361 = vset.pattern.permute.xlu0 0
        %362 = vperm.xlu0 %361, %v327
        %v363 = vpop.permute.xlu0 %362
        %364 = vset.pattern.permute.xlu0 0
        %365 = vperm.xlu0 %364, %v328
        %v366 = vpop.permute.xlu0 %365
        %367 = vset.pattern.permute.xlu0 0
        %368 = vperm.xlu0 %367, %v329
        %v369 = vpop.permute.xlu0 %368
        %370 = vset.pattern.permute.xlu0 0
        %371 = vperm.xlu0 %370, %v330
        %v372 = vpop.permute.xlu0 %371
        %373 = vset.pattern.permute.xlu0 0
        %374 = vperm.xlu0 %373, %v331
        %v375 = vpop.permute.xlu0 %374
        %376 = vset.pattern.permute.xlu0 0
        %377 = vperm.xlu0 %376, %v332
        %v378 = vpop.permute.xlu0 %377
        %379 = vset.pattern.permute.xlu0 0
        %380 = vperm.xlu0 %379, %v333
        %v381 = vpop.permute.xlu0 %380
        %382 = vset.pattern.permute.xlu0 0
        %383 = vperm.xlu0 %382, %v334
        %v384 = vpop.permute.xlu0 %383
        %vm385 = vcmp.eq.s32.totalorder %v336, %v339
        %vm386 = vcmp.eq.s32.totalorder %v336, %v342
        %vm387 = vcmp.eq.s32.totalorder %v336, %v345
        %vm388 = vcmp.eq.s32.totalorder %v336, %v348
        %vm389 = vcmp.eq.s32.totalorder %v336, %v351
        %vm390 = vcmp.eq.s32.totalorder %v336, %v354
        %vm391 = vcmp.eq.s32.totalorder %v336, %v357
        %vm392 = vcmp.eq.s32.totalorder %v336, %v360
        %vm393 = vcmp.eq.s32.totalorder %v336, %v363
        %vm394 = vcmp.eq.s32.totalorder %v336, %v366
        %vm395 = vcmp.eq.s32.totalorder %v336, %v369
        %vm396 = vcmp.eq.s32.totalorder %v336, %v372
        %vm397 = vcmp.eq.s32.totalorder %v336, %v375
        %vm398 = vcmp.eq.s32.totalorder %v336, %v378
        %vm399 = vcmp.eq.s32.totalorder %v336, %v381
        %vm400 = vcmp.eq.s32.totalorder %v336, %v384
        %v401 = vadd.s32 %v319, 8
        %v402 = vadd.s32 %v320, 8
        %v403 = vadd.s32 %v321, 8
        %v404 = vadd.s32 %v322, 8
        %v405 = vadd.s32 %v323, 8
        %v406 = vadd.s32 %v324, 8
        %v407 = vadd.s32 %v325, 8
        %v408 = vadd.s32 %v326, 8
        %v409 = vadd.s32 %v327, 8
        %v410 = vadd.s32 %v328, 8
        %v411 = vadd.s32 %v329, 8
        %v412 = vadd.s32 %v330, 8
        %v413 = vadd.s32 %v331, 8
        %v414 = vadd.s32 %v332, 8
        %v415 = vadd.s32 %v333, 8
        %v416 = vadd.s32 %v334, 8
        %417 = vset.pattern.permute.xlu0 1
        %418 = vperm.xlu0 %417, %v401
        %v419 = vpop.permute.xlu0 %418
        %420 = vset.pattern.permute.xlu0 1
        %421 = vperm.xlu0 %420, %v402
        %v422 = vpop.permute.xlu0 %421
        %423 = vset.pattern.permute.xlu0 1
        %424 = vperm.xlu0 %423, %v403
        %v425 = vpop.permute.xlu0 %424
        %426 = vset.pattern.permute.xlu0 1
        %427 = vperm.xlu0 %426, %v404
        %v428 = vpop.permute.xlu0 %427
        %429 = vset.pattern.permute.xlu0 1
        %430 = vperm.xlu0 %429, %v405
        %v431 = vpop.permute.xlu0 %430
        %432 = vset.pattern.permute.xlu0 1
        %433 = vperm.xlu0 %432, %v406
        %v434 = vpop.permute.xlu0 %433
        %435 = vset.pattern.permute.xlu0 1
        %436 = vperm.xlu0 %435, %v407
        %v437 = vpop.permute.xlu0 %436
        %438 = vset.pattern.permute.xlu0 1
        %439 = vperm.xlu0 %438, %v408
        %v440 = vpop.permute.xlu0 %439
        %441 = vset.pattern.permute.xlu0 1
        %442 = vperm.xlu0 %441, %v409
        %v443 = vpop.permute.xlu0 %442
        %444 = vset.pattern.permute.xlu0 1
        %445 = vperm.xlu0 %444, %v410
        %v446 = vpop.permute.xlu0 %445
        %447 = vset.pattern.permute.xlu0 1
        %448 = vperm.xlu0 %447, %v411
        %v449 = vpop.permute.xlu0 %448
        %450 = vset.pattern.permute.xlu0 1
        %451 = vperm.xlu0 %450, %v412
        %v452 = vpop.permute.xlu0 %451
        %453 = vset.pattern.permute.xlu0 1
        %454 = vperm.xlu0 %453, %v413
        %v455 = vpop.permute.xlu0 %454
        %456 = vset.pattern.permute.xlu0 1
        %457 = vperm.xlu0 %456, %v414
        %v458 = vpop.permute.xlu0 %457
        %459 = vset.pattern.permute.xlu0 1
        %460 = vperm.xlu0 %459, %v415
        %v461 = vpop.permute.xlu0 %460
        %462 = vset.pattern.permute.xlu0 1
        %463 = vperm.xlu0 %462, %v416
        %v464 = vpop.permute.xlu0 %463
        %vm465 = vcmp.eq.s32.totalorder %v336, %v419
        %vm466 = vcmp.eq.s32.totalorder %v336, %v422
        %vm467 = vcmp.eq.s32.totalorder %v336, %v425
        %vm468 = vcmp.eq.s32.totalorder %v336, %v428
        %vm469 = vcmp.eq.s32.totalorder %v336, %v431
        %vm470 = vcmp.eq.s32.totalorder %v336, %v434
        %vm471 = vcmp.eq.s32.totalorder %v336, %v437
        %vm472 = vcmp.eq.s32.totalorder %v336, %v440
        %vm473 = vcmp.eq.s32.totalorder %v336, %v443
        %vm474 = vcmp.eq.s32.totalorder %v336, %v446
        %vm475 = vcmp.eq.s32.totalorder %v336, %v449
        %vm476 = vcmp.eq.s32.totalorder %v336, %v452
        %vm477 = vcmp.eq.s32.totalorder %v336, %v455
        %vm478 = vcmp.eq.s32.totalorder %v336, %v458
        %vm479 = vcmp.eq.s32.totalorder %v336, %v461
        %vm480 = vcmp.eq.s32.totalorder %v336, %v464
        %vm481 = vmor %vm385, %vm465
        %vm482 = vmor %vm386, %vm466
        %vm483 = vmor %vm387, %vm467
        %vm484 = vmor %vm388, %vm468
        %vm485 = vmor %vm389, %vm469
        %vm486 = vmor %vm390, %vm470
        %vm487 = vmor %vm391, %vm471
        %vm488 = vmor %vm392, %vm472
        %vm489 = vmor %vm393, %vm473
        %vm490 = vmor %vm394, %vm474
        %vm491 = vmor %vm395, %vm475
        %vm492 = vmor %vm396, %vm476
        %vm493 = vmor %vm397, %vm477
        %vm494 = vmor %vm398, %vm478
        %vm495 = vmor %vm399, %vm479
        %vm496 = vmor %vm400, %vm480
        %v497 = vadd.s32 %v319, 20
        %v498 = vadd.s32 %v320, 20
        %v499 = vadd.s32 %v321, 20
        %v500 = vadd.s32 %v322, 20
        %v501 = vadd.s32 %v323, 20
        %v502 = vadd.s32 %v324, 20
        %v503 = vadd.s32 %v325, 20
        %v504 = vadd.s32 %v326, 20
        %v505 = vadd.s32 %v327, 20
        %v506 = vadd.s32 %v328, 20
        %v507 = vadd.s32 %v329, 20
        %v508 = vadd.s32 %v330, 20
        %v509 = vadd.s32 %v331, 20
        %v510 = vadd.s32 %v332, 20
        %v511 = vadd.s32 %v333, 20
        %v512 = vadd.s32 %v334, 20
        %513 = vset.pattern.permute.xlu0 2
        %514 = vperm.xlu0 %513, %v497
        %v515 = vpop.permute.xlu0 %514
        %516 = vset.pattern.permute.xlu0 2
        %517 = vperm.xlu0 %516, %v498
        %v518 = vpop.permute.xlu0 %517
        %519 = vset.pattern.permute.xlu0 2
        %520 = vperm.xlu0 %519, %v499
        %v521 = vpop.permute.xlu0 %520
        %522 = vset.pattern.permute.xlu0 2
        %523 = vperm.xlu0 %522, %v500
        %v524 = vpop.permute.xlu0 %523
        %525 = vset.pattern.permute.xlu0 2
        %526 = vperm.xlu0 %525, %v501
        %v527 = vpop.permute.xlu0 %526
        %528 = vset.pattern.permute.xlu0 2
        %529 = vperm.xlu0 %528, %v502
        %v530 = vpop.permute.xlu0 %529
        %531 = vset.pattern.permute.xlu0 2
        %532 = vperm.xlu0 %531, %v503
        %v533 = vpop.permute.xlu0 %532
        %534 = vset.pattern.permute.xlu0 2
        %535 = vperm.xlu0 %534, %v504
        %v536 = vpop.permute.xlu0 %535
        %537 = vset.pattern.permute.xlu0 2
        %538 = vperm.xlu0 %537, %v505
        %v539 = vpop.permute.xlu0 %538
        %540 = vset.pattern.permute.xlu0 2
        %541 = vperm.xlu0 %540, %v506
        %v542 = vpop.permute.xlu0 %541
        %543 = vset.pattern.permute.xlu0 2
        %544 = vperm.xlu0 %543, %v507
        %v545 = vpop.permute.xlu0 %544
        %546 = vset.pattern.permute.xlu0 2
        %547 = vperm.xlu0 %546, %v508
        %v548 = vpop.permute.xlu0 %547
        %549 = vset.pattern.permute.xlu0 2
        %550 = vperm.xlu0 %549, %v509
        %v551 = vpop.permute.xlu0 %550
        %552 = vset.pattern.permute.xlu0 2
        %553 = vperm.xlu0 %552, %v510
        %v554 = vpop.permute.xlu0 %553
        %555 = vset.pattern.permute.xlu0 2
        %556 = vperm.xlu0 %555, %v511
        %v557 = vpop.permute.xlu0 %556
        %558 = vset.pattern.permute.xlu0 2
        %559 = vperm.xlu0 %558, %v512
        %v560 = vpop.permute.xlu0 %559
        %vm561 = vcmp.eq.s32.totalorder %v336, %v515
        %vm562 = vcmp.eq.s32.totalorder %v336, %v518
        %vm563 = vcmp.eq.s32.totalorder %v336, %v521
        %vm564 = vcmp.eq.s32.totalorder %v336, %v524
        %vm565 = vcmp.eq.s32.totalorder %v336, %v527
        %vm566 = vcmp.eq.s32.totalorder %v336, %v530
        %vm567 = vcmp.eq.s32.totalorder %v336, %v533
        %vm568 = vcmp.eq.s32.totalorder %v336, %v536
        %vm569 = vcmp.eq.s32.totalorder %v336, %v539
        %vm570 = vcmp.eq.s32.totalorder %v336, %v542
        %vm571 = vcmp.eq.s32.totalorder %v336, %v545
        %vm572 = vcmp.eq.s32.totalorder %v336, %v548
        %vm573 = vcmp.eq.s32.totalorder %v336, %v551
        %vm574 = vcmp.eq.s32.totalorder %v336, %v554
        %vm575 = vcmp.eq.s32.totalorder %v336, %v557
        %vm576 = vcmp.eq.s32.totalorder %v336, %v560
        %vm577 = vmor %vm481, %vm561
        %vm578 = vmor %vm482, %vm562
        %vm579 = vmor %vm483, %vm563
        %vm580 = vmor %vm484, %vm564
        %vm581 = vmor %vm485, %vm565
        %vm582 = vmor %vm486, %vm566
        %vm583 = vmor %vm487, %vm567
        %vm584 = vmor %vm488, %vm568
        %vm585 = vmor %vm489, %vm569
        %vm586 = vmor %vm490, %vm570
        %vm587 = vmor %vm491, %vm571
        %vm588 = vmor %vm492, %vm572
        %vm589 = vmor %vm493, %vm573
        %vm590 = vmor %vm494, %vm574
        %vm591 = vmor %vm495, %vm575
        %vm592 = vmor %vm496, %vm576
        %v593 = vsel %vm577, 1, 0
        %v594 = vsel %vm578, 1, 0
        %v595 = vsel %vm579, 1, 0
        %v596 = vsel %vm580, 1, 0
        %v597 = vsel %vm581, 1, 0
        %v598 = vsel %vm582, 1, 0
        %v599 = vsel %vm583, 1, 0
        %v600 = vsel %vm584, 1, 0
        %v601 = vsel %vm585, 1, 0
        %v602 = vsel %vm586, 1, 0
        %v603 = vsel %vm587, 1, 0
        %v604 = vsel %vm588, 1, 0
        %v605 = vsel %vm589, 1, 0
        %v606 = vsel %vm590, 1, 0
        %v607 = vsel %vm591, 1, 0
        %v608 = vsel %vm592, 1, 0
        %v609 = vcvt.s32.f32 %v593
        %v610 = vcvt.s32.f32 %v594
        %v611 = vcvt.s32.f32 %v595
        %v612 = vcvt.s32.f32 %v596
        %v613 = vcvt.s32.f32 %v597
        %v614 = vcvt.s32.f32 %v598
        %v615 = vcvt.s32.f32 %v599
        %v616 = vcvt.s32.f32 %v600
        %v617 = vcvt.s32.f32 %v601
        %v618 = vcvt.s32.f32 %v602
        %v619 = vcvt.s32.f32 %v603
        %v620 = vcvt.s32.f32 %v604
        %v621 = vcvt.s32.f32 %v605
        %v622 = vcvt.s32.f32 %v606
        %v623 = vcvt.s32.f32 %v607
        %v624 = vcvt.s32.f32 %v608
        %v625 = vpack.c.bf16 %v610, %v609
        %v626 = vpack.c.bf16 %v612, %v611
        %v627 = vpack.c.bf16 %v614, %v613
        %v628 = vpack.c.bf16 %v616, %v615
        %v629 = vpack.c.bf16 %v618, %v617
        %v630 = vpack.c.bf16 %v620, %v619
        %v631 = vpack.c.bf16 %v622, %v621
        %v632 = vpack.c.bf16 %v624, %v623
        %v633 = vpack.c.bf16 %v304, %v303
        %v634 = vpack.c.bf16 %v306, %v305
        %v635 = vpack.c.bf16 %v308, %v307
        %v636 = vpack.c.bf16 %v310, %v309
        %v637 = vpack.c.bf16 %v312, %v311
        %v638 = vpack.c.bf16 %v314, %v313
        %v639 = vpack.c.bf16 %v316, %v315
        %v640 = vpack.c.bf16 %v318, %v317
        %v641 = vld [vmem:[%s2] sm:$0xff]
        %v642 = vld [vmem:[%s2 + $0x8] sm:$0xff]
        %v643 = vld [vmem:[%s3] sm:$0xff]
        %v644 = vld [vmem:[%s3 + $0x8] sm:$0xff]
        %v645 = vld [vmem:[%s3 + $0x10] sm:$0xff]
        %v646 = vld [vmem:[%s3 + $0x18] sm:$0xff]
        %v647 = vld [vmem:[%s3 + $0x20] sm:$0xff]
        %v648 = vld [vmem:[%s3 + $0x28] sm:$0xff]
        %v649 = vld [vmem:[%s3 + $0x30] sm:$0xff]
        %v650 = vld [vmem:[%s3 + $0x38] sm:$0xff]
        %v651 = vld [vmem:[%s3 + $0x40] sm:$0xff]
        %v652 = vld [vmem:[%s3 + $0x48] sm:$0xff]
        %v653 = vld [vmem:[%s3 + $0x50] sm:$0xff]
        %v654 = vld [vmem:[%s3 + $0x58] sm:$0xff]
        %v655 = vld [vmem:[%s3 + $0x60] sm:$0xff]
        %v656 = vld [vmem:[%s3 + $0x68] sm:$0xff]
        %v657 = vld [vmem:[%s3 + $0x70] sm:$0xff]
        %v658 = vld [vmem:[%s3 + $0x78] sm:$0xff]
        %v675 = vunpack.c.l.b16 %v643
        %v676 = vunpack.c.h.b16 %v643
        %v677 = vunpack.c.l.b16 %v644
        %v678 = vunpack.c.h.b16 %v644
        %v679 = vunpack.c.l.b16 %v645
        %v680 = vunpack.c.h.b16 %v645
        %v681 = vunpack.c.l.b16 %v646
        %v682 = vunpack.c.h.b16 %v646
        %v683 = vunpack.c.l.b16 %v647
        %v684 = vunpack.c.h.b16 %v647
        %v685 = vunpack.c.l.b16 %v648
        %v686 = vunpack.c.h.b16 %v648
        %v687 = vunpack.c.l.b16 %v649
        %v688 = vunpack.c.h.b16 %v649
        %v689 = vunpack.c.l.b16 %v650
        %v690 = vunpack.c.h.b16 %v650
        %v691 = vunpack.c.l.b16 %v651
        %v692 = vunpack.c.h.b16 %v651
        %v693 = vunpack.c.l.b16 %v652
        %v694 = vunpack.c.h.b16 %v652
        %v695 = vunpack.c.l.b16 %v653
        %v696 = vunpack.c.h.b16 %v653
        %v697 = vunpack.c.l.b16 %v654
        %v698 = vunpack.c.h.b16 %v654
        %v699 = vunpack.c.l.b16 %v655
        %v700 = vunpack.c.h.b16 %v655
        %v701 = vunpack.c.l.b16 %v656
        %v702 = vunpack.c.h.b16 %v656
        %v703 = vunpack.c.l.b16 %v657
        %v704 = vunpack.c.h.b16 %v657
        %v705 = vunpack.c.l.b16 %v658
        %v706 = vunpack.c.h.b16 %v658
        %v707 = vpack.c.b16 %v677, %v675
        %v708 = vpack.c.b16 %v678, %v676
        %v709 = vpack.c.b16 %v681, %v679
        %v710 = vpack.c.b16 %v682, %v680
        %v711 = vpack.c.b16 %v685, %v683
        %v712 = vpack.c.b16 %v686, %v684
        %v713 = vpack.c.b16 %v689, %v687
        %v714 = vpack.c.b16 %v690, %v688
        %v715 = vpack.c.b16 %v693, %v691
        %v716 = vpack.c.b16 %v694, %v692
        %v717 = vpack.c.b16 %v697, %v695
        %v718 = vpack.c.b16 %v698, %v696
        %v719 = vpack.c.b16 %v701, %v699
        %v720 = vpack.c.b16 %v702, %v700
        %v721 = vpack.c.b16 %v705, %v703
        %v722 = vpack.c.b16 %v706, %v704
        %739 = vmatprep.subr.bf16.mxu0 %v722
        %740 = vmatpush1.bf16.msra.mxu0 %v721
        %741 = vmatprep.subr.bf16.mxu0 %v720
        %742 = vmatpush1.bf16.msra.mxu0 %v719
        %743 = vmatprep.subr.bf16.mxu0 %v718
        %744 = vmatpush1.bf16.msra.mxu0 %v717
        %745 = vmatprep.subr.bf16.mxu0 %v716
        %746 = vmatpush1.bf16.msra.mxu0 %v715
        %747 = vmatprep.subr.bf16.mxu0 %v714
        %748 = vmatpush1.bf16.msra.mxu0 %v713
        %749 = vmatprep.subr.bf16.mxu0 %v712
        %750 = vmatpush1.bf16.msra.mxu0 %v711
        %751 = vmatprep.subr.bf16.mxu0 %v710
        %752 = vmatpush1.bf16.msra.mxu0 %v709
        %753 = vmatprep.subr.bf16.mxu0 %v708
        %754 = vmatpush1.bf16.msra.mxu0 %v707
        %755 = vmatprep.subr.bf16.mxu0 0
        %756 = vmatpush2.bf16.msra.mxu0 0
        %757 = vmatprep.subr.bf16.mxu0 0
        %758 = vmatpush2.bf16.msra.mxu0 0
        %759 = vmatprep.subr.bf16.mxu0 0
        %760 = vmatpush2.bf16.msra.mxu0 0
        %761 = vmatprep.subr.bf16.mxu0 0
        %762 = vmatpush2.bf16.msra.mxu0 0
        %763 = vmatprep.subr.bf16.mxu0 0
        %764 = vmatpush2.bf16.msra.mxu0 0
        %765 = vmatprep.subr.bf16.mxu0 0
        %766 = vmatpush2.bf16.msra.mxu0 0
        %767 = vmatprep.subr.bf16.mxu0 0
        %768 = vmatpush2.bf16.msra.mxu0 0
        %769 = vmatprep.subr.bf16.mxu0 0
        %770 = vmatpush2.bf16.msra.mxu0 0
        %771 = vmatprep.mubr.bf16.mxu0 0
        %772 = vmatmul.mubr.bf16.gmra.mxu0 %v625
        %v773 = vpop.f32.mrf.mxu0
        %v774 = vadd.f32 0.0, %v773
        %v775 = vpop.f32.mrf.mxu0
        %v776 = vadd.f32 0.0, %v775
        %v777 = vpop.f32.mrf.mxu0
        %v778 = vadd.f32 0.0, %v777
        %v779 = vpop.f32.mrf.mxu0
        %v780 = vadd.f32 0.0, %v779
        %781 = vmatprep.mubr.bf16.mxu0 0
        %782 = vmatmul.mubr.bf16.gmra.mxu0 %v626
        %v783 = vpop.f32.mrf.mxu0
        %v784 = vadd.f32 0.0, %v783
        %v785 = vpop.f32.mrf.mxu0
        %v786 = vadd.f32 0.0, %v785
        %v787 = vpop.f32.mrf.mxu0
        %v788 = vadd.f32 0.0, %v787
        %v789 = vpop.f32.mrf.mxu0
        %v790 = vadd.f32 0.0, %v789
        %791 = vmatprep.mubr.bf16.mxu0 0
        %792 = vmatmul.mubr.bf16.gmra.mxu0 %v627
        %v793 = vpop.f32.mrf.mxu0
        %v794 = vadd.f32 0.0, %v793
        %v795 = vpop.f32.mrf.mxu0
        %v796 = vadd.f32 0.0, %v795
        %v797 = vpop.f32.mrf.mxu0
        %v798 = vadd.f32 0.0, %v797
        %v799 = vpop.f32.mrf.mxu0
        %v800 = vadd.f32 0.0, %v799
        %801 = vmatprep.mubr.bf16.mxu0 0
        %802 = vmatmul.mubr.bf16.gmra.mxu0 %v628
        %v803 = vpop.f32.mrf.mxu0
        %v804 = vadd.f32 0.0, %v803
        %v805 = vpop.f32.mrf.mxu0
        %v806 = vadd.f32 0.0, %v805
        %v807 = vpop.f32.mrf.mxu0
        %v808 = vadd.f32 0.0, %v807
        %v809 = vpop.f32.mrf.mxu0
        %v810 = vadd.f32 0.0, %v809
        %811 = vmatprep.mubr.bf16.mxu0 0
        %812 = vmatmul.mubr.bf16.gmra.mxu0 %v629
        %v813 = vpop.f32.mrf.mxu0
        %v814 = vadd.f32 0.0, %v813
        %v815 = vpop.f32.mrf.mxu0
        %v816 = vadd.f32 0.0, %v815
        %v817 = vpop.f32.mrf.mxu0
        %v818 = vadd.f32 0.0, %v817
        %v819 = vpop.f32.mrf.mxu0
        %v820 = vadd.f32 0.0, %v819
        %821 = vmatprep.mubr.bf16.mxu0 0
        %822 = vmatmul.mubr.bf16.gmra.mxu0 %v630
        %v823 = vpop.f32.mrf.mxu0
        %v824 = vadd.f32 0.0, %v823
        %v825 = vpop.f32.mrf.mxu0
        %v826 = vadd.f32 0.0, %v825
        %v827 = vpop.f32.mrf.mxu0
        %v828 = vadd.f32 0.0, %v827
        %v829 = vpop.f32.mrf.mxu0
        %v830 = vadd.f32 0.0, %v829
        %831 = vmatprep.mubr.bf16.mxu0 0
        %832 = vmatmul.mubr.bf16.gmra.mxu0 %v631
        %v833 = vpop.f32.mrf.mxu0
        %v834 = vadd.f32 0.0, %v833
        %v835 = vpop.f32.mrf.mxu0
        %v836 = vadd.f32 0.0, %v835
        %v837 = vpop.f32.mrf.mxu0
        %v838 = vadd.f32 0.0, %v837
        %v839 = vpop.f32.mrf.mxu0
        %v840 = vadd.f32 0.0, %v839
        %841 = vmatprep.mubr.bf16.mxu0 0
        %842 = vmatmul.mubr.bf16.gmra.mxu0 %v632
        %v843 = vpop.f32.mrf.mxu0
        %v844 = vadd.f32 0.0, %v843
        %v845 = vpop.f32.mrf.mxu0
        %v846 = vadd.f32 0.0, %v845
        %v847 = vpop.f32.mrf.mxu0
        %v848 = vadd.f32 0.0, %v847
        %v849 = vpop.f32.mrf.mxu0
        %v850 = vadd.f32 0.0, %v849
        %851 = vdwg.mxu0
        %v854 = vunpack.c.l.b16 %v641
        %v855 = vunpack.c.h.b16 %v641
        %v856 = vunpack.c.l.b16 %v642
        %v857 = vunpack.c.h.b16 %v642
        %v858 = vpack.c.b16 %v856, %v854
        %v859 = vpack.c.b16 %v857, %v855
        %vm862 = vcmask 130048
        %v864 = vsel %vm862, %v633, 0
        %v867 = vsel %vm862, %v634, 0
        %v870 = vsel %vm862, %v635, 0
        %v873 = vsel %vm862, %v636, 0
        %v876 = vsel %vm862, %v637, 0
        %v879 = vsel %vm862, %v638, 0
        %v882 = vsel %vm862, %v639, 0
        %v885 = vsel %vm862, %v640, 0
        %887 = vmatprep.subr.bf16.mxu0 0
        %888 = vmatpush1.bf16.msra.mxu0 0
        %889 = vmatprep.subr.bf16.mxu0 0
        %890 = vmatpush1.bf16.msra.mxu0 0
        %891 = vmatprep.subr.bf16.mxu0 0
        %892 = vmatpush1.bf16.msra.mxu0 0
        %893 = vmatprep.subr.bf16.mxu0 0
        %894 = vmatpush1.bf16.msra.mxu0 0
        %895 = vmatprep.subr.bf16.mxu0 0
        %896 = vmatpush1.bf16.msra.mxu0 0
        %897 = vmatprep.subr.bf16.mxu0 0
        %898 = vmatpush1.bf16.msra.mxu0 0
        %899 = vmatprep.subr.bf16.mxu0 0
        %900 = vmatpush1.bf16.msra.mxu0 0
        %901 = vmatprep.subr.bf16.mxu0 %v859
        %902 = vmatpush1.bf16.msra.mxu0 %v858
        %903 = vmatprep.subr.bf16.mxu0 0
        %904 = vmatpush2.bf16.msra.mxu0 0
        %905 = vmatprep.subr.bf16.mxu0 0
        %906 = vmatpush2.bf16.msra.mxu0 0
        %907 = vmatprep.subr.bf16.mxu0 0
        %908 = vmatpush2.bf16.msra.mxu0 0
        %909 = vmatprep.subr.bf16.mxu0 0
        %910 = vmatpush2.bf16.msra.mxu0 0
        %911 = vmatprep.subr.bf16.mxu0 0
        %912 = vmatpush2.bf16.msra.mxu0 0
        %913 = vmatprep.subr.bf16.mxu0 0
        %914 = vmatpush2.bf16.msra.mxu0 0
        %915 = vmatprep.subr.bf16.mxu0 0
        %916 = vmatpush2.bf16.msra.mxu0 0
        %917 = vmatprep.subr.bf16.mxu0 0
        %918 = vmatpush2.bf16.msra.mxu0 0
        %919 = vmatprep.mubr.bf16.mxu0 0
        %920 = vmatmul.mubr.bf16.gmra.mxu0 %v864
        %v921 = vpop.f32.mrf.mxu0
        %v922 = vadd.f32 %v774, %v921
        %v923 = vpop.f32.mrf.mxu0
        %v924 = vadd.f32 %v776, %v923
        %v925 = vpop.f32.mrf.mxu0
        %v926 = vadd.f32 %v778, %v925
        %v927 = vpop.f32.mrf.mxu0
        %v928 = vadd.f32 %v780, %v927
        %929 = vmatprep.mubr.bf16.mxu0 0
        %930 = vmatmul.mubr.bf16.gmra.mxu0 %v867
        %v931 = vpop.f32.mrf.mxu0
        %v932 = vadd.f32 %v784, %v931
        %v933 = vpop.f32.mrf.mxu0
        %v934 = vadd.f32 %v786, %v933
        %v935 = vpop.f32.mrf.mxu0
        %v936 = vadd.f32 %v788, %v935
        %v937 = vpop.f32.mrf.mxu0
        %v938 = vadd.f32 %v790, %v937
        %939 = vmatprep.mubr.bf16.mxu0 0
        %940 = vmatmul.mubr.bf16.gmra.mxu0 %v870
        %v941 = vpop.f32.mrf.mxu0
        %v942 = vadd.f32 %v794, %v941
        %v943 = vpop.f32.mrf.mxu0
        %v944 = vadd.f32 %v796, %v943
        %v945 = vpop.f32.mrf.mxu0
        %v946 = vadd.f32 %v798, %v945
        %v947 = vpop.f32.mrf.mxu0
        %v948 = vadd.f32 %v800, %v947
        %949 = vmatprep.mubr.bf16.mxu0 0
        %950 = vmatmul.mubr.bf16.gmra.mxu0 %v873
        %v951 = vpop.f32.mrf.mxu0
        %v952 = vadd.f32 %v804, %v951
        %v953 = vpop.f32.mrf.mxu0
        %v954 = vadd.f32 %v806, %v953
        %v955 = vpop.f32.mrf.mxu0
        %v956 = vadd.f32 %v808, %v955
        %v957 = vpop.f32.mrf.mxu0
        %v958 = vadd.f32 %v810, %v957
        %959 = vmatprep.mubr.bf16.mxu0 0
        %960 = vmatmul.mubr.bf16.gmra.mxu0 %v876
        %v961 = vpop.f32.mrf.mxu0
        %v962 = vadd.f32 %v814, %v961
        %v963 = vpop.f32.mrf.mxu0
        %v964 = vadd.f32 %v816, %v963
        %v965 = vpop.f32.mrf.mxu0
        %v966 = vadd.f32 %v818, %v965
        %v967 = vpop.f32.mrf.mxu0
        %v968 = vadd.f32 %v820, %v967
        %969 = vmatprep.mubr.bf16.mxu0 0
        %970 = vmatmul.mubr.bf16.gmra.mxu0 %v879
        %v971 = vpop.f32.mrf.mxu0
        %v972 = vadd.f32 %v824, %v971
        %v973 = vpop.f32.mrf.mxu0
        %v974 = vadd.f32 %v826, %v973
        %v975 = vpop.f32.mrf.mxu0
        %v976 = vadd.f32 %v828, %v975
        %v977 = vpop.f32.mrf.mxu0
        %v978 = vadd.f32 %v830, %v977
        %979 = vmatprep.mubr.bf16.mxu0 0
        %980 = vmatmul.mubr.bf16.gmra.mxu0 %v882
        %v981 = vpop.f32.mrf.mxu0
        %v982 = vadd.f32 %v834, %v981
        %v983 = vpop.f32.mrf.mxu0
        %v984 = vadd.f32 %v836, %v983
        %v985 = vpop.f32.mrf.mxu0
        %v986 = vadd.f32 %v838, %v985
        %v987 = vpop.f32.mrf.mxu0
        %v988 = vadd.f32 %v840, %v987
        %989 = vmatprep.mubr.bf16.mxu0 0
        %990 = vmatmul.mubr.bf16.gmra.mxu0 %v885
        %v991 = vpop.f32.mrf.mxu0
        %v992 = vadd.f32 %v844, %v991
        %v993 = vpop.f32.mrf.mxu0
        %v994 = vadd.f32 %v846, %v993
        %v995 = vpop.f32.mrf.mxu0
        %v996 = vadd.f32 %v848, %v995
        %v997 = vpop.f32.mrf.mxu0
        %v998 = vadd.f32 %v850, %v997
        %999 = vdwg.mxu0
        %v1000 = vld [vmem:[%s4] sm:$0x3]
        %v1002 = vlaneseq
        %v1003 = vshrl.u32 %v1002, 7
        %v1004 = vsub.s32 0, %v1003
        %v1005 = vrot.slane %v1000, %v1004
        %v1006 = vlaneseq
        %v1007 = vshrl.u32 %v1006, 7
        %v1008 = vsub.s32 1, %v1007
        %v1009 = vrot.slane %v1000, %v1008
        %v1012 = vadd.f32 %v922, %v1005
        %v1013 = vadd.f32 %v924, %v1009
        %v1014 = vadd.f32 %v926, %v1005
        %v1015 = vadd.f32 %v928, %v1009
        %v1016 = vadd.f32 %v932, %v1005
        %v1017 = vadd.f32 %v934, %v1009
        %v1018 = vadd.f32 %v936, %v1005
        %v1019 = vadd.f32 %v938, %v1009
        %v1020 = vadd.f32 %v942, %v1005
        %v1021 = vadd.f32 %v944, %v1009
        %v1022 = vadd.f32 %v946, %v1005
        %v1023 = vadd.f32 %v948, %v1009
        %v1024 = vadd.f32 %v952, %v1005
        %v1025 = vadd.f32 %v954, %v1009
        %v1026 = vadd.f32 %v956, %v1005
        %v1027 = vadd.f32 %v958, %v1009
        %v1028 = vadd.f32 %v962, %v1005
        %v1029 = vadd.f32 %v964, %v1009
        %v1030 = vadd.f32 %v966, %v1005
        %v1031 = vadd.f32 %v968, %v1009
        %v1032 = vadd.f32 %v972, %v1005
        %v1033 = vadd.f32 %v974, %v1009
        %v1034 = vadd.f32 %v976, %v1005
        %v1035 = vadd.f32 %v978, %v1009
        %v1036 = vadd.f32 %v982, %v1005
        %v1037 = vadd.f32 %v984, %v1009
        %v1038 = vadd.f32 %v986, %v1005
        %v1039 = vadd.f32 %v988, %v1009
        %v1040 = vadd.f32 %v992, %v1005
        %v1041 = vadd.f32 %v994, %v1009
        %v1042 = vadd.f32 %v996, %v1005
        %v1043 = vadd.f32 %v998, %v1009
        %v1044 = vmax.f32 %v1012, 0.0
        %v1045 = vmax.f32 %v1013, 0.0
        %v1046 = vmax.f32 %v1014, 0.0
        %v1047 = vmax.f32 %v1015, 0.0
        %v1048 = vmax.f32 %v1016, 0.0
        %v1049 = vmax.f32 %v1017, 0.0
        %v1050 = vmax.f32 %v1018, 0.0
        %v1051 = vmax.f32 %v1019, 0.0
        %v1052 = vmax.f32 %v1020, 0.0
        %v1053 = vmax.f32 %v1021, 0.0
        %v1054 = vmax.f32 %v1022, 0.0
        %v1055 = vmax.f32 %v1023, 0.0
        %v1056 = vmax.f32 %v1024, 0.0
        %v1057 = vmax.f32 %v1025, 0.0
        %v1058 = vmax.f32 %v1026, 0.0
        %v1059 = vmax.f32 %v1027, 0.0
        %v1060 = vmax.f32 %v1028, 0.0
        %v1061 = vmax.f32 %v1029, 0.0
        %v1062 = vmax.f32 %v1030, 0.0
        %v1063 = vmax.f32 %v1031, 0.0
        %v1064 = vmax.f32 %v1032, 0.0
        %v1065 = vmax.f32 %v1033, 0.0
        %v1066 = vmax.f32 %v1034, 0.0
        %v1067 = vmax.f32 %v1035, 0.0
        %v1068 = vmax.f32 %v1036, 0.0
        %v1069 = vmax.f32 %v1037, 0.0
        %v1070 = vmax.f32 %v1038, 0.0
        %v1071 = vmax.f32 %v1039, 0.0
        %v1072 = vmax.f32 %v1040, 0.0
        %v1073 = vmax.f32 %v1041, 0.0
        %v1074 = vmax.f32 %v1042, 0.0
        %v1075 = vmax.f32 %v1043, 0.0
        %v1076 = vpack.c.bf16 %v1046, %v1044
        %v1077 = vpack.c.bf16 %v1047, %v1045
        %v1078 = vpack.c.bf16 %v1050, %v1048
        %v1079 = vpack.c.bf16 %v1051, %v1049
        %v1080 = vpack.c.bf16 %v1054, %v1052
        %v1081 = vpack.c.bf16 %v1055, %v1053
        %v1082 = vpack.c.bf16 %v1058, %v1056
        %v1083 = vpack.c.bf16 %v1059, %v1057
        %v1084 = vpack.c.bf16 %v1062, %v1060
        %v1085 = vpack.c.bf16 %v1063, %v1061
        %v1086 = vpack.c.bf16 %v1066, %v1064
        %v1087 = vpack.c.bf16 %v1067, %v1065
        %v1088 = vpack.c.bf16 %v1070, %v1068
        %v1089 = vpack.c.bf16 %v1071, %v1069
        %v1090 = vpack.c.bf16 %v1074, %v1072
        %v1091 = vpack.c.bf16 %v1075, %v1073
        %v1092 = vld [vmem:[%s5] sm:$0xff]
        %v1093 = vld [vmem:[%s5 + $0x8] sm:$0xff]
        %v1094 = vld [vmem:[%s5 + $0x10] sm:$0xff]
        %v1095 = vld [vmem:[%s5 + $0x18] sm:$0xff]
        %v1096 = vld [vmem:[%s5 + $0x20] sm:$0xff]
        %v1097 = vld [vmem:[%s5 + $0x28] sm:$0xff]
        %v1098 = vld [vmem:[%s5 + $0x30] sm:$0xff]
        %v1099 = vld [vmem:[%s5 + $0x38] sm:$0xff]
        %v1100 = vld [vmem:[%s5 + $0x40] sm:$0xff]
        %v1101 = vld [vmem:[%s5 + $0x48] sm:$0xff]
        %v1102 = vld [vmem:[%s5 + $0x50] sm:$0xff]
        %v1103 = vld [vmem:[%s5 + $0x58] sm:$0xff]
        %v1104 = vld [vmem:[%s5 + $0x60] sm:$0xff]
        %v1105 = vld [vmem:[%s5 + $0x68] sm:$0xff]
        %v1106 = vld [vmem:[%s5 + $0x70] sm:$0xff]
        %v1107 = vld [vmem:[%s5 + $0x78] sm:$0xff]
        %v1108 = vld [vmem:[%s5 + $0x80] sm:$0xff]
        %v1109 = vld [vmem:[%s5 + $0x88] sm:$0xff]
        %v1110 = vld [vmem:[%s5 + $0x90] sm:$0xff]
        %v1111 = vld [vmem:[%s5 + $0x98] sm:$0xff]
        %v1112 = vld [vmem:[%s5 + $0xa0] sm:$0xff]
        %v1113 = vld [vmem:[%s5 + $0xa8] sm:$0xff]
        %v1114 = vld [vmem:[%s5 + $0xb0] sm:$0xff]
        %v1115 = vld [vmem:[%s5 + $0xb8] sm:$0xff]
        %v1116 = vld [vmem:[%s5 + $0xc0] sm:$0xff]
        %v1117 = vld [vmem:[%s5 + $0xc8] sm:$0xff]
        %v1118 = vld [vmem:[%s5 + $0xd0] sm:$0xff]
        %v1119 = vld [vmem:[%s5 + $0xd8] sm:$0xff]
        %v1120 = vld [vmem:[%s5 + $0xe0] sm:$0xff]
        %v1121 = vld [vmem:[%s5 + $0xe8] sm:$0xff]
        %v1122 = vld [vmem:[%s5 + $0xf0] sm:$0xff]
        %v1123 = vld [vmem:[%s5 + $0xf8] sm:$0xff]
        %v1124 = vld [vmem:[%s6] sm:$0x3]
        %v1126 = vlaneseq
        %v1127 = vshrl.u32 %v1126, 7
        %v1128 = vsub.s32 0, %v1127
        %v1129 = vrot.slane %v1124, %v1128
        %v1130 = vlaneseq
        %v1131 = vshrl.u32 %v1130, 7
        %v1132 = vsub.s32 1, %v1131
        %v1133 = vrot.slane %v1124, %v1132
        %v1168 = vunpack.c.l.b16 %v1092
        %v1169 = vunpack.c.h.b16 %v1092
        %v1170 = vunpack.c.l.b16 %v1093
        %v1171 = vunpack.c.h.b16 %v1093
        %v1172 = vunpack.c.l.b16 %v1094
        %v1173 = vunpack.c.h.b16 %v1094
        %v1174 = vunpack.c.l.b16 %v1095
        %v1175 = vunpack.c.h.b16 %v1095
        %v1176 = vunpack.c.l.b16 %v1096
        %v1177 = vunpack.c.h.b16 %v1096
        %v1178 = vunpack.c.l.b16 %v1097
        %v1179 = vunpack.c.h.b16 %v1097
        %v1180 = vunpack.c.l.b16 %v1098
        %v1181 = vunpack.c.h.b16 %v1098
        %v1182 = vunpack.c.l.b16 %v1099
        %v1183 = vunpack.c.h.b16 %v1099
        %v1184 = vunpack.c.l.b16 %v1100
        %v1185 = vunpack.c.h.b16 %v1100
        %v1186 = vunpack.c.l.b16 %v1101
        %v1187 = vunpack.c.h.b16 %v1101
        %v1188 = vunpack.c.l.b16 %v1102
        %v1189 = vunpack.c.h.b16 %v1102
        %v1190 = vunpack.c.l.b16 %v1103
        %v1191 = vunpack.c.h.b16 %v1103
        %v1192 = vunpack.c.l.b16 %v1104
        %v1193 = vunpack.c.h.b16 %v1104
        %v1194 = vunpack.c.l.b16 %v1105
        %v1195 = vunpack.c.h.b16 %v1105
        %v1196 = vunpack.c.l.b16 %v1106
        %v1197 = vunpack.c.h.b16 %v1106
        %v1198 = vunpack.c.l.b16 %v1107
        %v1199 = vunpack.c.h.b16 %v1107
        %v1200 = vunpack.c.l.b16 %v1108
        %v1201 = vunpack.c.h.b16 %v1108
        %v1202 = vunpack.c.l.b16 %v1109
        %v1203 = vunpack.c.h.b16 %v1109
        %v1204 = vunpack.c.l.b16 %v1110
        %v1205 = vunpack.c.h.b16 %v1110
        %v1206 = vunpack.c.l.b16 %v1111
        %v1207 = vunpack.c.h.b16 %v1111
        %v1208 = vunpack.c.l.b16 %v1112
        %v1209 = vunpack.c.h.b16 %v1112
        %v1210 = vunpack.c.l.b16 %v1113
        %v1211 = vunpack.c.h.b16 %v1113
        %v1212 = vunpack.c.l.b16 %v1114
        %v1213 = vunpack.c.h.b16 %v1114
        %v1214 = vunpack.c.l.b16 %v1115
        %v1215 = vunpack.c.h.b16 %v1115
        %v1216 = vunpack.c.l.b16 %v1116
        %v1217 = vunpack.c.h.b16 %v1116
        %v1218 = vunpack.c.l.b16 %v1117
        %v1219 = vunpack.c.h.b16 %v1117
        %v1220 = vunpack.c.l.b16 %v1118
        %v1221 = vunpack.c.h.b16 %v1118
        %v1222 = vunpack.c.l.b16 %v1119
        %v1223 = vunpack.c.h.b16 %v1119
        %v1224 = vunpack.c.l.b16 %v1120
        %v1225 = vunpack.c.h.b16 %v1120
        %v1226 = vunpack.c.l.b16 %v1121
        %v1227 = vunpack.c.h.b16 %v1121
        %v1228 = vunpack.c.l.b16 %v1122
        %v1229 = vunpack.c.h.b16 %v1122
        %v1230 = vunpack.c.l.b16 %v1123
        %v1231 = vunpack.c.h.b16 %v1123
        %v1232 = vpack.c.b16 %v1170, %v1168
        %v1233 = vpack.c.b16 %v1171, %v1169
        %v1234 = vpack.c.b16 %v1174, %v1172
        %v1235 = vpack.c.b16 %v1175, %v1173
        %v1236 = vpack.c.b16 %v1178, %v1176
        %v1237 = vpack.c.b16 %v1179, %v1177
        %v1238 = vpack.c.b16 %v1182, %v1180
        %v1239 = vpack.c.b16 %v1183, %v1181
        %v1240 = vpack.c.b16 %v1186, %v1184
        %v1241 = vpack.c.b16 %v1187, %v1185
        %v1242 = vpack.c.b16 %v1190, %v1188
        %v1243 = vpack.c.b16 %v1191, %v1189
        %v1244 = vpack.c.b16 %v1194, %v1192
        %v1245 = vpack.c.b16 %v1195, %v1193
        %v1246 = vpack.c.b16 %v1198, %v1196
        %v1247 = vpack.c.b16 %v1199, %v1197
        %v1248 = vpack.c.b16 %v1202, %v1200
        %v1249 = vpack.c.b16 %v1203, %v1201
        %v1250 = vpack.c.b16 %v1206, %v1204
        %v1251 = vpack.c.b16 %v1207, %v1205
        %v1252 = vpack.c.b16 %v1210, %v1208
        %v1253 = vpack.c.b16 %v1211, %v1209
        %v1254 = vpack.c.b16 %v1214, %v1212
        %v1255 = vpack.c.b16 %v1215, %v1213
        %v1256 = vpack.c.b16 %v1218, %v1216
        %v1257 = vpack.c.b16 %v1219, %v1217
        %v1258 = vpack.c.b16 %v1222, %v1220
        %v1259 = vpack.c.b16 %v1223, %v1221
        %v1260 = vpack.c.b16 %v1226, %v1224
        %v1261 = vpack.c.b16 %v1227, %v1225
        %v1262 = vpack.c.b16 %v1230, %v1228
        %v1263 = vpack.c.b16 %v1231, %v1229
        %1296 = vmatprep.subr.bf16.mxu0 %v1247
        %1297 = vmatpush1.bf16.msra.mxu0 %v1246
        %1298 = vmatprep.subr.bf16.mxu0 %v1245
        %1299 = vmatpush1.bf16.msra.mxu0 %v1244
        %1300 = vmatprep.subr.bf16.mxu0 %v1243
        %1301 = vmatpush1.bf16.msra.mxu0 %v1242
        %1302 = vmatprep.subr.bf16.mxu0 %v1241
        %1303 = vmatpush1.bf16.msra.mxu0 %v1240
        %1304 = vmatprep.subr.bf16.mxu0 %v1239
        %1305 = vmatpush1.bf16.msra.mxu0 %v1238
        %1306 = vmatprep.subr.bf16.mxu0 %v1237
        %1307 = vmatpush1.bf16.msra.mxu0 %v1236
        %1308 = vmatprep.subr.bf16.mxu0 %v1235
        %1309 = vmatpush1.bf16.msra.mxu0 %v1234
        %1310 = vmatprep.subr.bf16.mxu0 %v1233
        %1311 = vmatpush1.bf16.msra.mxu0 %v1232
        %1312 = vmatprep.subr.bf16.mxu0 %v1263
        %1313 = vmatpush2.bf16.msra.mxu0 %v1262
        %1314 = vmatprep.subr.bf16.mxu0 %v1261
        %1315 = vmatpush2.bf16.msra.mxu0 %v1260
        %1316 = vmatprep.subr.bf16.mxu0 %v1259
        %1317 = vmatpush2.bf16.msra.mxu0 %v1258
        %1318 = vmatprep.subr.bf16.mxu0 %v1257
        %1319 = vmatpush2.bf16.msra.mxu0 %v1256
        %1320 = vmatprep.subr.bf16.mxu0 %v1255
        %1321 = vmatpush2.bf16.msra.mxu0 %v1254
        %1322 = vmatprep.subr.bf16.mxu0 %v1253
        %1323 = vmatpush2.bf16.msra.mxu0 %v1252
        %1324 = vmatprep.subr.bf16.mxu0 %v1251
        %1325 = vmatpush2.bf16.msra.mxu0 %v1250
        %1326 = vmatprep.subr.bf16.mxu0 %v1249
        %1327 = vmatpush2.bf16.msra.mxu0 %v1248
        %1328 = vmatprep.mubr.bf16.mxu0 %v1077
        %1329 = vmatmul.mubr.bf16.gmra.mxu0 %v1076
        %v1330 = vpop.f32.mrf.mxu0
        %v1331 = vadd.f32 %v1129, %v1330
        %v1332 = vpop.f32.mrf.mxu0
        %v1333 = vadd.f32 %v1133, %v1332
        %v1334 = vpop.f32.mrf.mxu0
        %v1335 = vadd.f32 %v1129, %v1334
        %v1336 = vpop.f32.mrf.mxu0
        %v1337 = vadd.f32 %v1133, %v1336
        %1338 = vmatprep.mubr.bf16.mxu0 %v1079
        %1339 = vmatmul.mubr.bf16.gmra.mxu0 %v1078
        %v1340 = vpop.f32.mrf.mxu0
        %v1341 = vadd.f32 %v1129, %v1340
        %v1342 = vpop.f32.mrf.mxu0
        %v1343 = vadd.f32 %v1133, %v1342
        %v1344 = vpop.f32.mrf.mxu0
        %v1345 = vadd.f32 %v1129, %v1344
        %v1346 = vpop.f32.mrf.mxu0
        %v1347 = vadd.f32 %v1133, %v1346
        %1348 = vmatprep.mubr.bf16.mxu0 %v1081
        %1349 = vmatmul.mubr.bf16.gmra.mxu0 %v1080
        %v1350 = vpop.f32.mrf.mxu0
        %v1351 = vadd.f32 %v1129, %v1350
        %v1352 = vpop.f32.mrf.mxu0
        %v1353 = vadd.f32 %v1133, %v1352
        %v1354 = vpop.f32.mrf.mxu0
        %v1355 = vadd.f32 %v1129, %v1354
        %v1356 = vpop.f32.mrf.mxu0
        %v1357 = vadd.f32 %v1133, %v1356
        %1358 = vmatprep.mubr.bf16.mxu0 %v1083
        %1359 = vmatmul.mubr.bf16.gmra.mxu0 %v1082
        %v1360 = vpop.f32.mrf.mxu0
        %v1361 = vadd.f32 %v1129, %v1360
        %v1362 = vpop.f32.mrf.mxu0
        %v1363 = vadd.f32 %v1133, %v1362
        %v1364 = vpop.f32.mrf.mxu0
        %v1365 = vadd.f32 %v1129, %v1364
        %v1366 = vpop.f32.mrf.mxu0
        %v1367 = vadd.f32 %v1133, %v1366
        %1368 = vmatprep.mubr.bf16.mxu0 %v1085
        %1369 = vmatmul.mubr.bf16.gmra.mxu0 %v1084
        %v1370 = vpop.f32.mrf.mxu0
        %v1371 = vadd.f32 %v1129, %v1370
        %v1372 = vpop.f32.mrf.mxu0
        %v1373 = vadd.f32 %v1133, %v1372
        %v1374 = vpop.f32.mrf.mxu0
        %v1375 = vadd.f32 %v1129, %v1374
        %v1376 = vpop.f32.mrf.mxu0
        %v1377 = vadd.f32 %v1133, %v1376
        %1378 = vmatprep.mubr.bf16.mxu0 %v1087
        %1379 = vmatmul.mubr.bf16.gmra.mxu0 %v1086
        %v1380 = vpop.f32.mrf.mxu0
        %v1381 = vadd.f32 %v1129, %v1380
        %v1382 = vpop.f32.mrf.mxu0
        %v1383 = vadd.f32 %v1133, %v1382
        %v1384 = vpop.f32.mrf.mxu0
        %v1385 = vadd.f32 %v1129, %v1384
        %v1386 = vpop.f32.mrf.mxu0
        %v1387 = vadd.f32 %v1133, %v1386
        %1388 = vmatprep.mubr.bf16.mxu0 %v1089
        %1389 = vmatmul.mubr.bf16.gmra.mxu0 %v1088
        %v1390 = vpop.f32.mrf.mxu0
        %v1391 = vadd.f32 %v1129, %v1390
        %v1392 = vpop.f32.mrf.mxu0
        %v1393 = vadd.f32 %v1133, %v1392
        %v1394 = vpop.f32.mrf.mxu0
        %v1395 = vadd.f32 %v1129, %v1394
        %v1396 = vpop.f32.mrf.mxu0
        %v1397 = vadd.f32 %v1133, %v1396
        %1398 = vmatprep.mubr.bf16.mxu0 %v1091
        %1399 = vmatmul.mubr.bf16.gmra.mxu0 %v1090
        %v1400 = vpop.f32.mrf.mxu0
        %v1401 = vadd.f32 %v1129, %v1400
        %v1402 = vpop.f32.mrf.mxu0
        %v1403 = vadd.f32 %v1133, %v1402
        %v1404 = vpop.f32.mrf.mxu0
        %v1405 = vadd.f32 %v1129, %v1404
        %v1406 = vpop.f32.mrf.mxu0
        %v1407 = vadd.f32 %v1133, %v1406
        %1408 = vdwg.mxu0
        %v1409 = vpack.c.bf16 %v1335, %v1331
        %v1410 = vpack.c.bf16 %v1337, %v1333
        %v1411 = vpack.c.bf16 %v1345, %v1341
        %v1412 = vpack.c.bf16 %v1347, %v1343
        %v1413 = vpack.c.bf16 %v1355, %v1351
        %v1414 = vpack.c.bf16 %v1357, %v1353
        %v1415 = vpack.c.bf16 %v1365, %v1361
        %v1416 = vpack.c.bf16 %v1367, %v1363
        %v1417 = vpack.c.bf16 %v1375, %v1371
        %v1418 = vpack.c.bf16 %v1377, %v1373
        %v1419 = vpack.c.bf16 %v1385, %v1381
        %v1420 = vpack.c.bf16 %v1387, %v1383
        %v1421 = vpack.c.bf16 %v1395, %v1391
        %v1422 = vpack.c.bf16 %v1397, %v1393
        %v1423 = vpack.c.bf16 %v1405, %v1401
        %v1424 = vpack.c.bf16 %v1407, %v1403
        %v1441 = vunpack.c.l.b16 %v1409
        %v1442 = vunpack.c.l.b16 %v1410
        %v1443 = vunpack.c.h.b16 %v1409
        %v1444 = vunpack.c.h.b16 %v1410
        %v1445 = vunpack.c.l.b16 %v1411
        %v1446 = vunpack.c.l.b16 %v1412
        %v1447 = vunpack.c.h.b16 %v1411
        %v1448 = vunpack.c.h.b16 %v1412
        %v1449 = vunpack.c.l.b16 %v1413
        %v1450 = vunpack.c.l.b16 %v1414
        %v1451 = vunpack.c.h.b16 %v1413
        %v1452 = vunpack.c.h.b16 %v1414
        %v1453 = vunpack.c.l.b16 %v1415
        %v1454 = vunpack.c.l.b16 %v1416
        %v1455 = vunpack.c.h.b16 %v1415
        %v1456 = vunpack.c.h.b16 %v1416
        %v1457 = vunpack.c.l.b16 %v1417
        %v1458 = vunpack.c.l.b16 %v1418
        %v1459 = vunpack.c.h.b16 %v1417
        %v1460 = vunpack.c.h.b16 %v1418
        %v1461 = vunpack.c.l.b16 %v1419
        %v1462 = vunpack.c.l.b16 %v1420
        %v1463 = vunpack.c.h.b16 %v1419
        %v1464 = vunpack.c.h.b16 %v1420
        %v1465 = vunpack.c.l.b16 %v1421
        %v1466 = vunpack.c.l.b16 %v1422
        %v1467 = vunpack.c.h.b16 %v1421
        %v1468 = vunpack.c.h.b16 %v1422
        %v1469 = vunpack.c.l.b16 %v1423
        %v1470 = vunpack.c.l.b16 %v1424
        %v1471 = vunpack.c.h.b16 %v1423
        %v1472 = vunpack.c.h.b16 %v1424
        %v1473 = vpack.c.b16 %v1442, %v1441
        %v1474 = vpack.c.b16 %v1444, %v1443
        %v1475 = vpack.c.b16 %v1446, %v1445
        %v1476 = vpack.c.b16 %v1448, %v1447
        %v1477 = vpack.c.b16 %v1450, %v1449
        %v1478 = vpack.c.b16 %v1452, %v1451
        %v1479 = vpack.c.b16 %v1454, %v1453
        %v1480 = vpack.c.b16 %v1456, %v1455
        %v1481 = vpack.c.b16 %v1458, %v1457
        %v1482 = vpack.c.b16 %v1460, %v1459
        %v1483 = vpack.c.b16 %v1462, %v1461
        %v1484 = vpack.c.b16 %v1464, %v1463
        %v1485 = vpack.c.b16 %v1466, %v1465
        %v1486 = vpack.c.b16 %v1468, %v1467
        %v1487 = vpack.c.b16 %v1470, %v1469
        %v1488 = vpack.c.b16 %v1472, %v1471
        %1505 = vst [vmem:[%s288] sm:$0xff] %v1473
        %1506 = vst [vmem:[%s288 + $0x8] sm:$0xff] %v1474
        %1507 = vst [vmem:[%s288 + $0x10] sm:$0xff] %v1475
        %1508 = vst [vmem:[%s288 + $0x18] sm:$0xff] %v1476
        %1509 = vst [vmem:[%s288 + $0x20] sm:$0xff] %v1477
        %1510 = vst [vmem:[%s288 + $0x28] sm:$0xff] %v1478
        %1511 = vst [vmem:[%s288 + $0x30] sm:$0xff] %v1479
        %1512 = vst [vmem:[%s288 + $0x38] sm:$0xff] %v1480
        %1513 = vst [vmem:[%s288 + $0x40] sm:$0xff] %v1481
        %1514 = vst [vmem:[%s288 + $0x48] sm:$0xff] %v1482
        %1515 = vst [vmem:[%s288 + $0x50] sm:$0xff] %v1483
        %1516 = vst [vmem:[%s288 + $0x58] sm:$0xff] %v1484
        %1517 = vst [vmem:[%s288 + $0x60] sm:$0xff] %v1485
        %1518 = vst [vmem:[%s288 + $0x68] sm:$0xff] %v1486
        %1519 = vst [vmem:[%s288 + $0x70] sm:$0xff] %v1487
        %1520 = vst [vmem:[%s288 + $0x78] sm:$0xff] %v1488
        %s1521 = sand.u32 %s186, 1
        %s1522 = scalar_lea.sflag [#allocation3], %s1521
        %s1523 = sand.u32 %s186, 1
        %s1524 = smul.addr %s1523, 128
        %s1525 = scalar_lea.vmem [#allocation2], %s1524
        // Predicated region
        $region49: #{tpu_custom_call.1} parent=47 // pred_check
          %p1526 = pneg %p196
        $region50: #{tpu_custom_call.1} parent=47 // pred_check_branch
          %1528 = sbr.rel (%p1526) target = $region52
        $region51: #{tpu_custom_call.1} parent=47 // pred_region
          %s1529 = smul.u32 16, %s21
          %s1531 = ssub.s32 2048, 2048
          %1532 = vsyncadd %s1522, %s1531
          %s1533 = smul.addr %s1529, 2
          %s1534 = smul.addr %s1533, 64
          %s1535 = scalar_lea.hbm %s7, %s1534
          %s1536 = sshll.u32 %s1525, 4
          %s1537 = int_to_ptr.vmem [resolvable:$true] %s1536
          %1542 = dma.vmem_to_hbm [thread:$0]  %s1537, 2048, %s1535, %s1522, 128, 128, 8
        $region52: #{tpu_custom_call.1} parent=47 // pred_fallthru
          _
      $region48: #{tpu_custom_call.1} parent=5 // pred_fallthru
        _
      %p1543 = scmp.le.s32.totalorder 2, %s16
      // Predicated region
      $region53: #{tpu_custom_call.1} parent=5 // pred_check
        %p1544 = pneg %p1543
      $region54: #{tpu_custom_call.1} parent=5 // pred_check_branch
        %1546 = sbr.rel (%p1544) target = $region56
      $region55: #{tpu_custom_call.1} parent=5 // pred_region
        %s1547 = ssub.s32 %s16, 2
        // Predicated region
        $region57: #{tpu_custom_call.1} parent=55 // pred_check
          %p1548 = pneg %p202
        $region58: #{tpu_custom_call.1} parent=55 // pred_check_branch
          %1550 = sbr.rel (%p1548) target = $region60
        $region59: #{tpu_custom_call.1} parent=55 // pred_region
          %s1551 = sand.u32 %s187, 1
          %s1552 = scalar_lea.sflag [#allocation3], %s1551
          %s1553 = sand.u32 %s187, 1
          %s1554 = smul.addr %s1553, 128
          %s1555 = scalar_lea.vmem [#allocation2], %s1554
          %1556 = dma.done %s1552, 2048
        $region60: #{tpu_custom_call.1} parent=55 // pred_fallthru
          _
      $region56: #{tpu_custom_call.1} parent=5 // pred_fallthru
        _
    $region6: #{tpu_custom_call.1} parent=1 // loop_footer
      %s20 = sadd.s32 1, %s16
    $region7: #{tpu_custom_call.1} parent=1 // loop_footer_branch
      %15 = sbr.rel target = $region3
    $region8: #{tpu_custom_call.1} parent=1 // loop_exit
      _
    %1557 = vsyncpa [#allocation3], 1
    %s1558 = scalar_lea.sflag [#allocation3], 1
    %1559 = vsyncpa %s1558, 1

</llo_original>
